<compile_context>
chip_gen: v7x
topology: tpu7x:2x2x1
jax: 0.10.0
libtpu: 0.0.40
codegen_flags: <defaults>
</compile_context>

<pallas_src>
import functools

import jax
import jax.numpy as jnp
from jax import lax
from jax.experimental import pallas as pl
from jax.experimental.pallas import tpu as pltpu

LANE = 128
LEAKY_SLOPE = 0.2


def _round_up(x, m):
    return (x + m - 1) // m * m


def _vmem_limit_bytes():
    """Per-generation scoped-VMEM limit (don't size everything for v7x)."""
    try:
        cap = pltpu.get_tpu_info().vmem_capacity_bytes
    except Exception:
        cap = 64 * 1024 * 1024            # conservative fallback
    return int(min(cap * 3 // 4, 100 * 1024 * 1024))


# ----------------------------------------------------------------------------
# Pallas kernels
# ----------------------------------------------------------------------------
def _conv_bias_act_kernel(x_ref, w_ref, b_ref, o_ref, acc_ref, *, offsets, use_act):
    """Conv for one image: kk*kk shifted-slice matmuls on the flattened padded
    activation, accumulated in f32, + bias (+ LeakyReLU).  No norm."""
    m = acc_ref.shape[0]
    for t, off in enumerate(offsets):
        tap = jnp.dot(x_ref[0, pl.ds(off, m), :], w_ref[t],
                      preferred_element_type=jnp.float32)
        if t == 0:
            acc_ref[...] = tap
        else:
            acc_ref[...] += tap
    y = acc_ref[...] + b_ref[...]                       # (M, OC) + (1, OC)
    if use_act:
        y = jnp.where(y > 0, y, LEAKY_SLOPE * y)
    o_ref[...] = y[None].astype(o_ref.dtype)


def _conv_stats_kernel(x_ref, w_ref, mask_ref, y_ref, sum_ref, ssq_ref, acc_ref,
                       *, offsets):
    """Conv for one image + per-image partial BN statistics.  The f32 column
    mask zeroes the over-complete (garbage) columns so the statistics never
    depend on padding."""
    m = acc_ref.shape[0]
    for t, off in enumerate(offsets):
        tap = jnp.dot(x_ref[0, pl.ds(off, m), :], w_ref[t],
                      preferred_element_type=jnp.float32)
        if t == 0:
            acc_ref[...] = tap
        else:
            acc_ref[...] += tap
    y = acc_ref[...]                                     # (M, OC) f32
    y_ref[...] = y[None].astype(y_ref.dtype)             # bf16 writeback
    ym = y * mask_ref[0]                                  # (M, OC) * (M, 1)
    sum_ref[...] = jnp.sum(ym, axis=0, keepdims=True).reshape(sum_ref.shape)
    ssq_ref[...] = jnp.sum(ym * y, axis=0, keepdims=True).reshape(ssq_ref.shape)


def _scale_shift_act_kernel(y_ref, sc_ref, sh_ref, o_ref, *, use_act):
    """Folded BatchNorm (y*scale + shift) + LeakyReLU on whole-image blocks."""
    y = y_ref[0].astype(jnp.float32) * sc_ref[...] + sh_ref[...]
    if use_act:
        y = jnp.where(y > 0, y, LEAKY_SLOPE * y)
    o_ref[...] = y[None].astype(o_ref.dtype)


# ----------------------------------------------------------------------------
# XLA-side layout prep: pad (+ space-to-depth for s==2) and flatten, so the
# stride-s kxk conv becomes kk*kk contiguous shifted-slice matmuls.
# ----------------------------------------------------------------------------
def _prepare_conv_inputs(x_nhwc, w_oihw, k, s, p):
    N, H, W, C = x_nhwc.shape
    OC = w_oihw.shape[0]
    OH = (H + 2 * p - k) // s + 1
    OW = (W + 2 * p - k) // s + 1

    xp = jnp.pad(x_nhwc, ((0, 0), (p, p), (p, p), (0, 0)))

    if s == 2:
        # Space-to-depth: stride-2 4x4 conv -> stride-1 2x2 conv on 4*C channels.
        Hp, Wp = xp.shape[1], xp.shape[2]
        xp = jnp.pad(xp, ((0, 0), (0, Hp % 2), (0, Wp % 2), (0, 0)))
        Hp, Wp = xp.shape[1], xp.shape[2]
        xs = xp.reshape(N, Hp // 2, 2, Wp // 2, 2, C)
        xs = xs.transpose(0, 1, 3, 2, 4, 5).reshape(N, Hp // 2, Wp // 2, 4 * C)
        kk, CC = 2, 4 * C
        wt = w_oihw.transpose(2, 3, 1, 0)               # (di, dj, c, oc)
        wt = wt.reshape(2, 2, 2, 2, C, OC)              # (a, ri, b, rj, c, oc)
        wt = wt.transpose(0, 2, 1, 3, 4, 5)             # (a, b, ri, rj, c, oc)
        w_taps = wt.reshape(kk * kk, CC, OC)
    elif s == 1:
        xs, kk, CC = xp, k, C
        w_taps = w_oihw.transpose(2, 3, 1, 0).reshape(kk * kk, CC, OC)
    else:
        raise NotImplementedError("stride must be 1 or 2")

    HP, WP = xs.shape[1], xs.shape[2]
    M_out = OH * WP                                      # over-complete: WP cols/row
    max_off = (kk - 1) * WP + (kk - 1)
    M_in = max(HP * WP, M_out + max_off)

    x_flat = xs.reshape(N, HP * WP, CC)
    if M_in > HP * WP:
        x_flat = jnp.pad(x_flat, ((0, 0), (0, M_in - HP * WP), (0, 0)))

    offsets = tuple(di * WP + dj for di in range(kk) for dj in range(kk))
    return x_flat, w_taps, offsets, (OH, OW, WP, M_out, M_in, CC)


# ----------------------------------------------------------------------------
# One layer: in-kernel conv (+BN partial stats) [+ folded BN + LeakyReLU]
# ----------------------------------------------------------------------------
def conv_layer_pallas(x_nhwc, prm, eps=1e-5):
    cfg = prm["cfg"]
    k, s, p, OC = cfg["k"], cfg["s"], cfg["p"], cfg["nf"]
    use_norm, use_act = cfg["norm"], cfg["act"]
    N = x_nhwc.shape[0]
    is_head = (not use_norm) and (not use_act)

    x_flat, w_taps, offsets, (OH, OW, WP, M_out, M_in, CC) = _prepare_conv_inputs(
        x_nhwc.astype(jnp.bfloat16), prm["w"], k, s, p)

    OC_pad = _round_up(OC, LANE)                # lane-dense stores for every layer
    w_taps = jnp.pad(w_taps, ((0, 0), (0, 0), (0, OC_pad - OC))).astype(jnp.bfloat16)
    kk2 = len(offsets)

    cparams = pltpu.CompilerParams(dimension_semantics=("parallel",),
                                   vmem_limit_bytes=_vmem_limit_bytes())

    x_spec = pl.BlockSpec((1, M_in, CC), lambda n: (n, 0, 0))
    w_spec = pl.BlockSpec((kk2, CC, OC_pad), lambda n: (0, 0, 0))      # resident
    y_spec = pl.BlockSpec((1, M_out, OC_pad), lambda n: (n, 0, 0))
    vec_spec = pl.BlockSpec((1, OC_pad), lambda n: (0, 0))
    acc_scratch = pltpu.VMEM((M_out, OC_pad), jnp.float32)

    if use_norm:
        stat_spec = pl.BlockSpec((1, 1, OC_pad), lambda n: (n, 0, 0))
        mask_spec = pl.BlockSpec((1, M_out, 1), lambda n: (0, 0, 0))
        col_mask = jnp.tile((jnp.arange(WP) < OW).astype(jnp.float32), OH)
        col_mask = col_mask.reshape(1, M_out, 1)

        y, psum, pssq = pl.pallas_call(
            functools.partial(_conv_stats_kernel, offsets=offsets),
            out_shape=(jax.ShapeDtypeStruct((N, M_out, OC_pad), jnp.bfloat16),
                       jax.ShapeDtypeStruct((N, 1, OC_pad), jnp.float32),
                       jax.ShapeDtypeStruct((N, 1, OC_pad), jnp.float32)),
            grid=(N,),
            in_specs=[x_spec, w_spec, mask_spec],
            out_specs=(y_spec, stat_spec, stat_spec),
            scratch_shapes=[acc_scratch],
            compiler_params=cparams,
        )(x_flat, w_taps, col_mask)

        # BatchNorm (training-mode batch statistics) from per-image partials.
        count = float(N * OH * OW)
        tot = jnp.sum(psum, axis=0).reshape(1, OC_pad)
        tsq = jnp.sum(pssq, axis=0).reshape(1, OC_pad)
        mean = tot / count
        var = jnp.maximum(tsq / count - mean * mean, 0.0)
        rstd = lax.rsqrt(var + eps)
        gamma = jnp.pad(prm["gamma"], (0, OC_pad - OC)).reshape(1, OC_pad)
        beta = jnp.pad(prm["beta"], (0, OC_pad - OC)).reshape(1, OC_pad)
        scale = gamma * rstd
        shift = beta - mean * scale

        y = pl.pallas_call(
            functools.partial(_scale_shift_act_kernel, use_act=use_act),
            out_shape=jax.ShapeDtypeStruct((N, M_out, OC_pad), jnp.bfloat16),
            grid=(N,),
            in_specs=[y_spec, vec_spec, vec_spec],
            out_specs=y_spec,
            compiler_params=cparams,
        )(y, scale, shift)
    else:
        bias = jnp.pad(prm["b"], (0, OC_pad - OC)).reshape(1, OC_pad)
        bias = bias.astype(jnp.float32)
        out_dtype = jnp.float32 if is_head else jnp.bfloat16
        y = pl.pallas_call(
            functools.partial(_conv_bias_act_kernel, offsets=offsets,
                              use_act=use_act),
            out_shape=jax.ShapeDtypeStruct((N, M_out, OC_pad), out_dtype),
            grid=(N,),
            in_specs=[x_spec, w_spec, vec_spec],
            out_specs=y_spec,
            scratch_shapes=[acc_scratch],
            compiler_params=cparams,
        )(x_flat, w_taps, bias)

    # Drop the over-complete columns and the OC padding (cheap XLA slice).
    return y.reshape(N, OH, WP, OC_pad)[:, :, :OW, :OC]


# ----------------------------------------------------------------------------
# Parameter construction (deterministic, mirrors PatchDiscriminator.__init__)
# ----------------------------------------------------------------------------
def make_discriminator_params(key, input_c, num_filters=64, n_down=3):
    cfgs = [dict(ni=input_c, nf=num_filters, k=4, s=2, p=1, norm=False, act=True)]
    for i in range(n_down):
        cfgs.append(dict(ni=num_filters * 2 ** i, nf=num_filters * 2 ** (i + 1),
                         k=4, s=1 if i == n_down - 1 else 2, p=1,
                         norm=True, act=True))
    cfgs.append(dict(ni=num_filters * 2 ** n_down, nf=1, k=4, s=1, p=1,
                     norm=False, act=False))

    params = []
    for cfg in cfgs:
        key, wk, bk, gk, btk = jax.random.split(key, 5)
        ni, nf, k = cfg["ni"], cfg["nf"], cfg["k"]
        w = jax.random.normal(wk, (nf, ni, k, k), jnp.float32) * 0.05   # OIHW
        b = (jax.random.normal(bk, (nf,), jnp.float32) * 0.05
             if not cfg["norm"] else jnp.zeros((nf,), jnp.float32))
        gamma = 1.0 + 0.1 * jax.random.normal(gk, (nf,), jnp.float32)
        beta = 0.1 * jax.random.normal(btk, (nf,), jnp.float32)
        params.append(dict(cfg=cfg, w=w, b=b, gamma=gamma, beta=beta))
    return params


# ----------------------------------------------------------------------------
# Forward pass (Pallas, NHWC internally) and pure-JAX reference (NCHW)
# ----------------------------------------------------------------------------
def patch_discriminator_forward(x_nchw, params):
    x = jnp.transpose(x_nchw, (0, 2, 3, 1))          # NHWC: channels on lanes
    for prm in params:
        x = conv_layer_pallas(x, prm)
    return jnp.transpose(x, (0, 3, 1, 2)).astype(jnp.float32)


def reference_forward(x, params, eps=1e-5):
    for prm in params:
        cfg = prm["cfg"]
        y = lax.conv_general_dilated(
            x.astype(jnp.bfloat16), prm["w"].astype(jnp.bfloat16),
            (cfg["s"], cfg["s"]),
            [(cfg["p"], cfg["p"]), (cfg["p"], cfg["p"])],
            dimension_numbers=("NCHW", "OIHW", "NCHW"),
            preferred_element_type=jnp.float32)
        y = y + prm["b"][None, :, None, None]
        if cfg["norm"]:
            mean = jnp.mean(y, axis=(0, 2, 3), keepdims=True)
            var = jnp.mean(jnp.square(y - mean), axis=(0, 2, 3), keepdims=True)
            y = (y - mean) / jnp.sqrt(var + eps)
            y = y * prm["gamma"][None, :, None, None] + prm["beta"][None, :, None, None]
        if cfg["act"]:
            y = jnp.where(y > 0, y, 0.2 * y)
        x = y
    return x


if __name__ == "__main__":
    key = jax.random.PRNGKey(0)
    kx, kp = jax.random.split(key)

    # Small but architecture-consistent config: PatchDiscriminator(3, 16, 3)
    N, C, H, W = 2, 3, 32, 32
    x = jax.random.normal(kx, (N, C, H, W), jnp.float32)
    params = make_discriminator_params(kp, input_c=C, num_filters=16, n_down=3)

    out = jax.block_until_ready(patch_discriminator_forward(x, params))
    ref = jax.block_until_ready(reference_forward(x, params))

    assert out.shape == ref.shape == (2, 1, 2, 2), out.shape
    max_err = float(jnp.max(jnp.abs(out - ref)))
    assert jnp.allclose(out, ref, atol=3e-2, rtol=3e-2), max_err

    print("KERNEL_OK")
</pallas_src>

<mosaic_0001>
module attributes {stable_mosaic.version = 11 : i64} {
  func.func @_conv_bias_act_kernel(%arg0: i32, %arg1: memref<1x290x12xbf16, #tpu.memory_space<vmem>>, %arg2: memref<4x12x128xbf16, #tpu.memory_space<vmem>>, %arg3: memref<1x128xf32, #tpu.memory_space<vmem>>, %arg4: memref<1x272x128xbf16, #tpu.memory_space<vmem>>, %arg5: memref<272x128xf32, #tpu.memory_space<vmem>>) attributes {dimension_semantics = [#tpu.dimension_semantics<parallel>], iteration_bounds = array<i64: 2>, scalar_prefetch = 0 : i64, scratch_operands = 1 : i64, tpu.core_type = #tpu.core_type<tc>, window_params = [{transform_indices = @transform_0, window_bounds = array<i64: 1, 290, 12>}, {pipeline_mode = #tpu.pipeline_mode<synchronous>, transform_indices = @transform_1, window_bounds = array<i64: 4, 12, 128>}, {pipeline_mode = #tpu.pipeline_mode<synchronous>, transform_indices = @transform_2, window_bounds = array<i64: 1, 128>}, {transform_indices = @transform_3, window_bounds = array<i64: 1, 272, 128>}]} {
    %c0 = arith.constant 0 : index
    %c0_0 = arith.constant 0 : index
    %c0_1 = arith.constant 0 : index
    %0 = vector.load %arg1[%c0, %c0_0, %c0_1] : memref<1x290x12xbf16, #tpu.memory_space<vmem>>, vector<1x272x12xbf16>
    %1 = vector.shape_cast %0 : vector<1x272x12xbf16> to vector<272x12xbf16>
    %c0_2 = arith.constant 0 : index
    %c0_3 = arith.constant 0 : index
    %c0_4 = arith.constant 0 : index
    %2 = vector.load %arg2[%c0_2, %c0_3, %c0_4] : memref<4x12x128xbf16, #tpu.memory_space<vmem>>, vector<1x12x128xbf16>
    %3 = vector.shape_cast %2 : vector<1x12x128xbf16> to vector<12x128xbf16>
    %cst = arith.constant dense<0.000000e+00> : vector<272x128xf32>
    %4 = tpu.matmul %1, %3, %cst {dimension_numbers = #tpu.dot_dimension_numbers<[1], [0], [0], [1], [0, 0, 1, 1], [], []>} : vector<272x12xbf16>, vector<12x128xbf16>, vector<272x128xf32> -> vector<272x128xf32>
    %c0_5 = arith.constant 0 : index
    %c0_6 = arith.constant 0 : index
    %5 = vector.load %arg5[%c0_5, %c0_6] : memref<272x128xf32, #tpu.memory_space<vmem>>, vector<272x128xf32>
    tpu.vector_store %arg5[%c0_5, %c0_6], %4 {strides = array<i32>} : memref<272x128xf32, #tpu.memory_space<vmem>>, vector<272x128xf32>,
    %c0_7 = arith.constant 0 : index
    %c1 = arith.constant 1 : index
    %c0_8 = arith.constant 0 : index
    %6 = vector.load %arg1[%c0_7, %c1, %c0_8] : memref<1x290x12xbf16, #tpu.memory_space<vmem>>, vector<1x272x12xbf16>
    %7 = vector.shape_cast %6 : vector<1x272x12xbf16> to vector<272x12xbf16>
    %c1_9 = arith.constant 1 : index
    %c0_10 = arith.constant 0 : index
    %c0_11 = arith.constant 0 : index
    %8 = vector.load %arg2[%c1_9, %c0_10, %c0_11] : memref<4x12x128xbf16, #tpu.memory_space<vmem>>, vector<1x12x128xbf16>
    %9 = vector.shape_cast %8 : vector<1x12x128xbf16> to vector<12x128xbf16>
    %cst_12 = arith.constant dense<0.000000e+00> : vector<272x128xf32>
    %10 = tpu.matmul %7, %9, %cst_12 {dimension_numbers = #tpu.dot_dimension_numbers<[1], [0], [0], [1], [0, 0, 1, 1], [], []>} : vector<272x12xbf16>, vector<12x128xbf16>, vector<272x128xf32> -> vector<272x128xf32>
    %c0_13 = arith.constant 0 : index
    %c0_14 = arith.constant 0 : index
    %11 = vector.load %arg5[%c0_13, %c0_14] : memref<272x128xf32, #tpu.memory_space<vmem>>, vector<272x128xf32>
    %12 = arith.addf %11, %10 : vector<272x128xf32>
    %c0_15 = arith.constant 0 : index
    %c0_16 = arith.constant 0 : index
    %13 = vector.load %arg5[%c0_15, %c0_16] : memref<272x128xf32, #tpu.memory_space<vmem>>, vector<272x128xf32>
    tpu.vector_store %arg5[%c0_15, %c0_16], %12 {strides = array<i32>} : memref<272x128xf32, #tpu.memory_space<vmem>>, vector<272x128xf32>,
    %c0_17 = arith.constant 0 : index
    %c17 = arith.constant 17 : index
    %c0_18 = arith.constant 0 : index
    %14 = vector.load %arg1[%c0_17, %c17, %c0_18] : memref<1x290x12xbf16, #tpu.memory_space<vmem>>, vector<1x272x12xbf16>
    %15 = vector.shape_cast %14 : vector<1x272x12xbf16> to vector<272x12xbf16>
    %c2 = arith.constant 2 : index
    %c0_19 = arith.constant 0 : index
    %c0_20 = arith.constant 0 : index
    %16 = vector.load %arg2[%c2, %c0_19, %c0_20] : memref<4x12x128xbf16, #tpu.memory_space<vmem>>, vector<1x12x128xbf16>
    %17 = vector.shape_cast %16 : vector<1x12x128xbf16> to vector<12x128xbf16>
    %cst_21 = arith.constant dense<0.000000e+00> : vector<272x128xf32>
    %18 = tpu.matmul %15, %17, %cst_21 {dimension_numbers = #tpu.dot_dimension_numbers<[1], [0], [0], [1], [0, 0, 1, 1], [], []>} : vector<272x12xbf16>, vector<12x128xbf16>, vector<272x128xf32> -> vector<272x128xf32>
    %c0_22 = arith.constant 0 : index
    %c0_23 = arith.constant 0 : index
    %19 = vector.load %arg5[%c0_22, %c0_23] : memref<272x128xf32, #tpu.memory_space<vmem>>, vector<272x128xf32>
    %20 = arith.addf %19, %18 : vector<272x128xf32>
    %c0_24 = arith.constant 0 : index
    %c0_25 = arith.constant 0 : index
    %21 = vector.load %arg5[%c0_24, %c0_25] : memref<272x128xf32, #tpu.memory_space<vmem>>, vector<272x128xf32>
    tpu.vector_store %arg5[%c0_24, %c0_25], %20 {strides = array<i32>} : memref<272x128xf32, #tpu.memory_space<vmem>>, vector<272x128xf32>,
    %c0_26 = arith.constant 0 : index
    %c18 = arith.constant 18 : index
    %c0_27 = arith.constant 0 : index
    %22 = vector.load %arg1[%c0_26, %c18, %c0_27] : memref<1x290x12xbf16, #tpu.memory_space<vmem>>, vector<1x272x12xbf16>
    %23 = vector.shape_cast %22 : vector<1x272x12xbf16> to vector<272x12xbf16>
    %c3 = arith.constant 3 : index
    %c0_28 = arith.constant 0 : index
    %c0_29 = arith.constant 0 : index
    %24 = vector.load %arg2[%c3, %c0_28, %c0_29] : memref<4x12x128xbf16, #tpu.memory_space<vmem>>, vector<1x12x128xbf16>
    %25 = vector.shape_cast %24 : vector<1x12x128xbf16> to vector<12x128xbf16>
    %cst_30 = arith.constant dense<0.000000e+00> : vector<272x128xf32>
    %26 = tpu.matmul %23, %25, %cst_30 {dimension_numbers = #tpu.dot_dimension_numbers<[1], [0], [0], [1], [0, 0, 1, 1], [], []>} : vector<272x12xbf16>, vector<12x128xbf16>, vector<272x128xf32> -> vector<272x128xf32>
    %c0_31 = arith.constant 0 : index
    %c0_32 = arith.constant 0 : index
    %27 = vector.load %arg5[%c0_31, %c0_32] : memref<272x128xf32, #tpu.memory_space<vmem>>, vector<272x128xf32>
    %28 = arith.addf %27, %26 : vector<272x128xf32>
    %c0_33 = arith.constant 0 : index
    %c0_34 = arith.constant 0 : index
    %29 = vector.load %arg5[%c0_33, %c0_34] : memref<272x128xf32, #tpu.memory_space<vmem>>, vector<272x128xf32>
    tpu.vector_store %arg5[%c0_33, %c0_34], %28 {strides = array<i32>} : memref<272x128xf32, #tpu.memory_space<vmem>>, vector<272x128xf32>,
    %c0_35 = arith.constant 0 : index
    %c0_36 = arith.constant 0 : index
    %30 = vector.load %arg5[%c0_35, %c0_36] : memref<272x128xf32, #tpu.memory_space<vmem>>, vector<272x128xf32>
    %c0_37 = arith.constant 0 : index
    %c0_38 = arith.constant 0 : index
    %31 = vector.load %arg3[%c0_37, %c0_38] : memref<1x128xf32, #tpu.memory_space<vmem>>, vector<1x128xf32>
    %32 = vector.broadcast %31 : vector<1x128xf32> to vector<272x128xf32>
    %33 = arith.addf %30, %32 : vector<272x128xf32>
    %cst_39 = arith.constant 0.000000e+00 : f32
    %34 = vector.broadcast %cst_39 : f32 to vector<272x128xf32>
    %35 = arith.cmpf ogt, %33, %34 : vector<272x128xf32>
    %cst_40 = arith.constant 2.000000e-01 : f32
    %36 = vector.broadcast %cst_40 : f32 to vector<272x128xf32>
    %37 = arith.mulf %36, %33 : vector<272x128xf32>
    %38 = arith.select %35, %33, %37 : vector<272x128xi1>, vector<272x128xf32>
    %39 = vector.shape_cast %38 : vector<272x128xf32> to vector<1x272x128xf32>
    %40 = arith.truncf %39 : vector<1x272x128xf32> to vector<1x272x128xbf16>
    %c0_41 = arith.constant 0 : index
    %c0_42 = arith.constant 0 : index
    %c0_43 = arith.constant 0 : index
    %41 = vector.load %arg4[%c0_41, %c0_42, %c0_43] : memref<1x272x128xbf16, #tpu.memory_space<vmem>>, vector<1x272x128xbf16>
    tpu.vector_store %arg4[%c0_41, %c0_42, %c0_43], %40 {strides = array<i32>} : memref<1x272x128xbf16, #tpu.memory_space<vmem>>, vector<1x272x128xbf16>,
    return
  }
  func.func @transform_0(%arg0: i32) -> (i32, i32, i32) {
    %c0_i32 = arith.constant 0 : i32
    %c0_i32_0 = arith.constant 0 : i32
    %c0_i32_1 = arith.constant 0 : i32
    return %arg0, %c0_i32, %c0_i32_0 : i32, i32, i32
  }
  func.func @transform_1(%arg0: i32) -> (i32, i32, i32) {
    %c0_i32 = arith.constant 0 : i32
    %c0_i32_0 = arith.constant 0 : i32
    %c0_i32_1 = arith.constant 0 : i32
    %c0_i32_2 = arith.constant 0 : i32
    return %c0_i32, %c0_i32_0, %c0_i32_1 : i32, i32, i32
  }
  func.func @transform_2(%arg0: i32) -> (i32, i32) {
    %c0_i32 = arith.constant 0 : i32
    %c0_i32_0 = arith.constant 0 : i32
    %c0_i32_1 = arith.constant 0 : i32
    return %c0_i32, %c0_i32_0 : i32, i32
  }
  func.func @transform_3(%arg0: i32) -> (i32, i32, i32) {
    %c0_i32 = arith.constant 0 : i32
    %c0_i32_0 = arith.constant 0 : i32
    %c0_i32_1 = arith.constant 0 : i32
    return %arg0, %c0_i32, %c0_i32_0 : i32, i32, i32
  }
}

</mosaic_0001>

<llo_original>
// kernel: tpu_custom_call.1
$region0: #{tpu_custom_call.1}
  #allocation0 [shape = 'u32[]', space=smem, size = 0x4, offset = 0x4, fixed_abs, tag = 'smem constant byte address 0x4 - core index']
  #allocation1 [shape = 'u32[144,128]{1,0:T(1,128)}', space=vmem, size = 0x12000, scoped, tag = 'internal scratch']
  #allocation2 [shape = 'f32[272,128]{1,0:T(8,128)}', space=vmem, size = 0x22000, scoped, tag = 'scratch operand']
  %s0 = inlined_call_operand.vmem [shape: bf16[2,290,12], index: 0, kind: input, shape index: {}]
  %s1 = inlined_call_operand.vmem [shape: bf16[4,12,128], index: 1, kind: input, shape index: {}]
  %s2 = inlined_call_operand.vmem [shape: f32[1,128], index: 2, kind: input, shape index: {}]
  %s3 = inlined_call_operand.hbm [shape: bf16[2,272,128], index: 3, kind: output, shape index: {}]
  %s4 = sld [smem:[#allocation0]]
  $region45: #{tpu_custom_call.1} parent=0
    _
  %s6 = ssub.s32 1, %s4
  %s7 = scalar_select 0, %s6, %s4
  $region1: #{tpu_custom_call.1} parent=0
    #allocation3 [shape = 'u8[139264]{0}', space=vmem, size = 0x22000, scoped, tag = 'output window, operand 0']
    #allocation4 [shape = 's32[2]{0}', space=sflag, size = 0x8, scoped, tag = 'scoped memory for tpu_custom_call.1']
    %8 = vsyncpa [#allocation4], 0
    %s9 = scalar_lea.sflag [#allocation4], 1
    %10 = vsyncpa %s9, 0
    loop: start=0, step=1, limit=4
    $region2: #{tpu_custom_call.1} parent=1 // loop_pre_header
      _
    $region3: #{tpu_custom_call.1} parent=1 // loop_header
      %s12 = sphi 0, %s16
      %p13 = scmp.ge.s32.totalorder %s12, 4
      %s22 = sphi 0, %s24
      %s25 = sphi 0, %s22
      %s26 = sphi 0, %s25
      %s42 = sphi 0, %s26
      %s46 = sphi 0, %s46
      %s48 = sphi 0, %s46
      %s49 = sphi 0, %s48
      %s63 = sphi 0, %s49
      %s67 = sphi 0, %s67
      %s69 = sphi 0, %s67
      %s70 = sphi 0, %s69
      %s84 = sphi 0, %s70
      %s90 = sphi 0, %s92
      %s93 = sphi 0, %s90
      %s94 = sphi 0, %s93
      %s110 = sphi 0, %s94
    $region4: #{tpu_custom_call.1} parent=1 // loop_header_branch
      %15 = sbr.rel (%p13) target = $region8
    $region5: #{tpu_custom_call.1} parent=1 // loop_body
      %s17 = ssub.s32 %s12, 1
      %s18 = ssub.s32 %s12, 2
      %s19 = sadd.s32 %s12, 1
      %s20 = ssub.s32 %s12, %s19
      %p21 = scmp.eq.s32.totalorder %s20, 0
      %s23 = sadd.s32 %s22, 1
      %s24 = scalar_select %p21, %s22, %s23
      %p27 = pneg %p21
      %p28 = scmp.eq.s32.totalorder %s12, 1
      %p29 = por %p27, %p28
      %p30 = scmp.ne.s32.totalorder %s22, %s25
      %p31 = scmp.eq.s32.totalorder %s12, 0
      %p32 = por %p30, %p31
      %p33 = scmp.ne.s32.totalorder %s22, %s25
      %p34 = scmp.eq.s32.totalorder %s17, 1
      %p35 = por %p33, %p34
      %p36 = scmp.ne.s32.totalorder %s25, %s26
      %p37 = scmp.eq.s32.totalorder %s17, 0
      %p38 = por %p36, %p37
      %p39 = scmp.ne.s32.totalorder %s25, %s26
      %p40 = scmp.eq.s32.totalorder %s18, 1
      %p41 = por %p39, %p40
      %p43 = scmp.ne.s32.totalorder %s26, %s42
      %p44 = scmp.eq.s32.totalorder %s18, 0
      %p45 = por %p43, %p44
      %s47 = sadd.s32 %s46, 1
      %p50 = scmp.eq.s32.totalorder %s12, 1
      %p51 = scmp.ne.s32.totalorder %s46, %s48
      %p52 = scmp.eq.s32.totalorder %s12, 0
      %p53 = por %p51, %p52
      %p54 = scmp.ne.s32.totalorder %s46, %s48
      %p55 = scmp.eq.s32.totalorder %s17, 1
      %p56 = por %p54, %p55
      %p57 = scmp.ne.s32.totalorder %s48, %s49
      %p58 = scmp.eq.s32.totalorder %s17, 0
      %p59 = por %p57, %p58
      %p60 = scmp.ne.s32.totalorder %s48, %s49
      %p61 = scmp.eq.s32.totalorder %s18, 1
      %p62 = por %p60, %p61
      %p64 = scmp.ne.s32.totalorder %s49, %s63
      %p65 = scmp.eq.s32.totalorder %s18, 0
      %p66 = por %p64, %p65
      %s68 = sadd.s32 %s67, 1
      %p71 = scmp.eq.s32.totalorder %s12, 1
      %p72 = scmp.ne.s32.totalorder %s67, %s69
      %p73 = scmp.eq.s32.totalorder %s12, 0
      %p74 = por %p72, %p73
      %p75 = scmp.ne.s32.totalorder %s67, %s69
      %p76 = scmp.eq.s32.totalorder %s17, 1
      %p77 = por %p75, %p76
      %p78 = scmp.ne.s32.totalorder %s69, %s70
      %p79 = scmp.eq.s32.totalorder %s17, 0
      %p80 = por %p78, %p79
      %p81 = scmp.ne.s32.totalorder %s69, %s70
      %p82 = scmp.eq.s32.totalorder %s18, 1
      %p83 = por %p81, %p82
      %p85 = scmp.ne.s32.totalorder %s70, %s84
      %p86 = scmp.eq.s32.totalorder %s18, 0
      %p87 = por %p85, %p86
      %s88 = ssub.s32 %s12, %s19
      %p89 = scmp.eq.s32.totalorder %s88, 0
      %s91 = sadd.s32 %s90, 1
      %s92 = scalar_select %p89, %s90, %s91
      %p95 = pneg %p89
      %p96 = scmp.eq.s32.totalorder %s12, 1
      %p97 = por %p95, %p96
      %p98 = scmp.ne.s32.totalorder %s90, %s93
      %p99 = scmp.eq.s32.totalorder %s12, 0
      %p100 = por %p98, %p99
      %p101 = scmp.ne.s32.totalorder %s90, %s93
      %p102 = scmp.eq.s32.totalorder %s17, 1
      %p103 = por %p101, %p102
      %p104 = scmp.ne.s32.totalorder %s93, %s94
      %p105 = scmp.eq.s32.totalorder %s17, 0
      %p106 = por %p104, %p105
      %p107 = scmp.ne.s32.totalorder %s93, %s94
      %p108 = scmp.eq.s32.totalorder %s18, 1
      %p109 = por %p107, %p108
      %p111 = scmp.ne.s32.totalorder %s94, %s110
      %p112 = scmp.eq.s32.totalorder %s18, 0
      %p113 = por %p111, %p112
      %p114 = scmp.le.s32.totalorder 1, %s12
      %p115 = scmp.lt.s32.totalorder %s12, 3
      %p116 = pnand %p114, %p115
      %p117 = pneg %p116
      // Predicated region
      $region9: #{tpu_custom_call.1} parent=5 // pred_check
        _
      $region10: #{tpu_custom_call.1} parent=5 // pred_check_branch
        %119 = sbr.rel (%p116) target = $region12
      $region11: #{tpu_custom_call.1} parent=5 // pred_region
        %s120 = ssub.s32 %s12, 1
        // Predicated region
        $region13: #{tpu_custom_call.1} parent=11 // pred_check
          %p121 = pneg %p59
        $region14: #{tpu_custom_call.1} parent=11 // pred_check_branch
          %123 = sbr.rel (%p121) target = $region16
        $region15: #{tpu_custom_call.1} parent=11 // pred_region
          _
        $region16: #{tpu_custom_call.1} parent=11 // pred_fallthru
          _
        // Predicated region
        $region17: #{tpu_custom_call.1} parent=11 // pred_check
          %p124 = pneg %p80
        $region18: #{tpu_custom_call.1} parent=11 // pred_check_branch
          %126 = sbr.rel (%p124) target = $region20
        $region19: #{tpu_custom_call.1} parent=11 // pred_region
          _
        $region20: #{tpu_custom_call.1} parent=11 // pred_fallthru
          _
      $region12: #{tpu_custom_call.1} parent=5 // pred_fallthru
        _
      %p127 = scmp.lt.s32.totalorder %s12, 2
      // Predicated region
      $region21: #{tpu_custom_call.1} parent=5 // pred_check
        %p128 = pneg %p127
      $region22: #{tpu_custom_call.1} parent=5 // pred_check_branch
        %130 = sbr.rel (%p128) target = $region24
      $region23: #{tpu_custom_call.1} parent=5 // pred_region
        // Predicated region
        $region25: #{tpu_custom_call.1} parent=23 // pred_check
          %p131 = pneg %p32
        $region26: #{tpu_custom_call.1} parent=23 // pred_check_branch
          %133 = sbr.rel (%p131) target = $region28
        $region27: #{tpu_custom_call.1} parent=23 // pred_region
          %p134 = scmp.lt.s32.totalorder %s12, 1
          %s135 = scalar_select %p134, %s12, 1
          %s136 = smul.addr %s135, 37
          %s137 = smul.addr %s136, 4
          %s138 = scalar_lea.vmem %s0, %s137
        $region28: #{tpu_custom_call.1} parent=23 // pred_fallthru
          _
      $region24: #{tpu_custom_call.1} parent=5 // pred_fallthru
        _
      %p139 = scmp.le.s32.totalorder 1, %s12
      %p140 = scmp.lt.s32.totalorder %s12, 3
      %p141 = pnand %p139, %p140
      %p142 = pneg %p141
      // Predicated region
      $region29: #{tpu_custom_call.1} parent=5 // pred_check
        _
      $region30: #{tpu_custom_call.1} parent=5 // pred_check_branch
        %144 = sbr.rel (%p141) target = $region32
      $region31: #{tpu_custom_call.1} parent=5 // pred_region
        %s145 = ssub.s32 %s12, 1
        %p146 = scmp.lt.s32.totalorder %s17, 1
        %s147 = scalar_select %p146, %s17, 1
        %s148 = smul.addr %s147, 37
        %s149 = smul.addr %s148, 4
        %s150 = scalar_lea.vmem %s0, %s149
        %p151 = pneg %p38
        %p152 = pneg %p35
        %p153 = pneg %p59
        %p154 = pneg %p56
        %p155 = pneg %p80
        %p156 = pneg %p77
        %p157 = pneg %p106
        %p158 = pneg %p103
        %s159 = sand.u32 %s93, 1
        %s160 = scalar_lea.sflag [#allocation4], %s159
        %s161 = sand.u32 %s93, 1
        %s162 = smul.addr %s161, 136
        %s163 = scalar_lea.vmem [#allocation3], %s162
        %p164 = scmp.lt.s32.totalorder %s17, 1
        %s165 = scalar_select %p164, %s17, 1
        %s166 = smul.addr %s165, 37
        %s167 = smul.addr %s166, 4
        %s168 = scalar_lea.vmem %s0, %s167
        %v170 = vld [vmem:[%s168] sm:$0xf]
        %v171 = vld [vmem:[%s168 + $0x4] sm:$0xf]
        %v172 = vld [vmem:[%s168 + $0x8] sm:$0xf]
        %v173 = vld [vmem:[%s168 + $0xc] sm:$0xf]
        %v174 = vld [vmem:[%s168 + $0x10] sm:$0xf]
        %v175 = vld [vmem:[%s168 + $0x14] sm:$0xf]
        %v176 = vld [vmem:[%s168 + $0x18] sm:$0xf]
        %v177 = vld [vmem:[%s168 + $0x1c] sm:$0xf]
        %v178 = vld [vmem:[%s168 + $0x20] sm:$0xf]
        %v179 = vld [vmem:[%s168 + $0x24] sm:$0xf]
        %v180 = vld [vmem:[%s168 + $0x28] sm:$0xf]
        %v181 = vld [vmem:[%s168 + $0x2c] sm:$0xf]
        %v182 = vld [vmem:[%s168 + $0x30] sm:$0xf]
        %v183 = vld [vmem:[%s168 + $0x34] sm:$0xf]
        %v184 = vld [vmem:[%s168 + $0x38] sm:$0xf]
        %v185 = vld [vmem:[%s168 + $0x3c] sm:$0xf]
        %v186 = vld [vmem:[%s168 + $0x40] sm:$0xf]
        %v187 = vld [vmem:[%s168 + $0x44] sm:$0xf]
        %v188 = vld [vmem:[%s168 + $0x48] sm:$0xf]
        %v189 = vld [vmem:[%s168 + $0x4c] sm:$0xf]
        %v190 = vld [vmem:[%s168 + $0x50] sm:$0xf]
        %v191 = vld [vmem:[%s168 + $0x54] sm:$0xf]
        %v192 = vld [vmem:[%s168 + $0x58] sm:$0xf]
        %v193 = vld [vmem:[%s168 + $0x5c] sm:$0xf]
        %v194 = vld [vmem:[%s168 + $0x60] sm:$0xf]
        %v195 = vld [vmem:[%s168 + $0x64] sm:$0xf]
        %v196 = vld [vmem:[%s168 + $0x68] sm:$0xf]
        %v197 = vld [vmem:[%s168 + $0x6c] sm:$0xf]
        %v198 = vld [vmem:[%s168 + $0x70] sm:$0xf]
        %v199 = vld [vmem:[%s168 + $0x74] sm:$0xf]
        %v200 = vld [vmem:[%s168 + $0x78] sm:$0xf]
        %v201 = vld [vmem:[%s168 + $0x7c] sm:$0xf]
        %v202 = vld [vmem:[%s168 + $0x80] sm:$0xf]
        %v203 = vld [vmem:[%s168 + $0x84] sm:$0xf]
        %v204 = vld [vmem:[%s1] sm:$0xf]
        %v205 = vld [vmem:[%s1 + $0x4] sm:$0x3]
        %v240 = vunpack.c.l.b16 %v170
        %v241 = vunpack.c.l.b16 %v171
        %v242 = vunpack.c.l.b16 %v172
        %v243 = vunpack.c.l.b16 %v173
        %v244 = vunpack.c.l.b16 %v174
        %v245 = vunpack.c.l.b16 %v175
        %v246 = vunpack.c.l.b16 %v176
        %v247 = vunpack.c.l.b16 %v177
        %v248 = vunpack.c.l.b16 %v178
        %v249 = vunpack.c.l.b16 %v179
        %v250 = vunpack.c.l.b16 %v180
        %v251 = vunpack.c.l.b16 %v181
        %v252 = vunpack.c.l.b16 %v182
        %v253 = vunpack.c.l.b16 %v183
        %v254 = vunpack.c.l.b16 %v184
        %v255 = vunpack.c.l.b16 %v185
        %v256 = vunpack.c.l.b16 %v186
        %v257 = vunpack.c.l.b16 %v187
        %v258 = vunpack.c.l.b16 %v188
        %v259 = vunpack.c.l.b16 %v189
        %v260 = vunpack.c.l.b16 %v190
        %v261 = vunpack.c.l.b16 %v191
        %v262 = vunpack.c.l.b16 %v192
        %v263 = vunpack.c.l.b16 %v193
        %v264 = vunpack.c.l.b16 %v194
        %v265 = vunpack.c.l.b16 %v195
        %v266 = vunpack.c.l.b16 %v196
        %v267 = vunpack.c.l.b16 %v197
        %v268 = vunpack.c.l.b16 %v198
        %v269 = vunpack.c.l.b16 %v199
        %v270 = vunpack.c.l.b16 %v200
        %v271 = vunpack.c.l.b16 %v201
        %v272 = vunpack.c.l.b16 %v202
        %v273 = vunpack.c.l.b16 %v203
        %v274 = vpack.c.b16 %v241, %v240
        %v275 = vpack.c.b16 %v243, %v242
        %v276 = vpack.c.b16 %v245, %v244
        %v277 = vpack.c.b16 %v247, %v246
        %v278 = vpack.c.b16 %v249, %v248
        %v279 = vpack.c.b16 %v251, %v250
        %v280 = vpack.c.b16 %v253, %v252
        %v281 = vpack.c.b16 %v255, %v254
        %v282 = vpack.c.b16 %v257, %v256
        %v283 = vpack.c.b16 %v259, %v258
        %v284 = vpack.c.b16 %v261, %v260
        %v285 = vpack.c.b16 %v263, %v262
        %v286 = vpack.c.b16 %v265, %v264
        %v287 = vpack.c.b16 %v267, %v266
        %v288 = vpack.c.b16 %v269, %v268
        %v289 = vpack.c.b16 %v271, %v270
        %v290 = vpack.c.b16 %v273, %v272
        %v293 = vunpack.c.l.b16 %v204
        %v294 = vunpack.c.l.b16 %v205
        %v295 = vpack.c.b16 %v294, %v293
        %vm296 = vcmask 97280
        %v298 = vsel %vm296, %v274, 0
        %v301 = vsel %vm296, %v275, 0
        %v304 = vsel %vm296, %v276, 0
        %v307 = vsel %vm296, %v277, 0
        %v310 = vsel %vm296, %v278, 0
        %v313 = vsel %vm296, %v279, 0
        %v316 = vsel %vm296, %v280, 0
        %v319 = vsel %vm296, %v281, 0
        %v322 = vsel %vm296, %v282, 0
        %v325 = vsel %vm296, %v283, 0
        %v328 = vsel %vm296, %v284, 0
        %v331 = vsel %vm296, %v285, 0
        %v334 = vsel %vm296, %v286, 0
        %v337 = vsel %vm296, %v287, 0
        %v340 = vsel %vm296, %v288, 0
        %v343 = vsel %vm296, %v289, 0
        %v346 = vsel %vm296, %v290, 0
        %vm348 = vcmask 1045504
        %v350 = vsel %vm348, %v295, 0
        %352 = vmatprep.subr.bf16.mxu0 0
        %353 = vmatpush1.bf16.msra.mxu0 %v350
        %354 = vmatprep.subr.bf16.mxu0 0
        %355 = vmatpush1.bf16.msra.mxu0 0
        %356 = vmatprep.subr.bf16.mxu0 0
        %357 = vmatpush1.bf16.msra.mxu0 0
        %358 = vmatprep.subr.bf16.mxu0 0
        %359 = vmatpush1.bf16.msra.mxu0 0
        %360 = vmatprep.subr.bf16.mxu0 0
        %361 = vmatpush1.bf16.msra.mxu0 0
        %362 = vmatprep.subr.bf16.mxu0 0
        %363 = vmatpush1.bf16.msra.mxu0 0
        %364 = vmatprep.subr.bf16.mxu0 0
        %365 = vmatpush1.bf16.msra.mxu0 0
        %366 = vmatprep.subr.bf16.mxu0 0
        %367 = vmatpush1.bf16.msra.mxu0 0
        %368 = vmatprep.subr.bf16.mxu0 0
        %369 = vmatpush1.bf16.msra.mxu0 0
        %370 = vmatprep.subr.bf16.mxu0 0
        %371 = vmatpush1.bf16.msra.mxu0 0
        %372 = vmatprep.subr.bf16.mxu0 0
        %373 = vmatpush1.bf16.msra.mxu0 0
        %374 = vmatprep.subr.bf16.mxu0 0
        %375 = vmatpush1.bf16.msra.mxu0 0
        %376 = vmatprep.subr.bf16.mxu0 0
        %377 = vmatpush1.bf16.msra.mxu0 0
        %378 = vmatprep.subr.bf16.mxu0 0
        %379 = vmatpush1.bf16.msra.mxu0 0
        %380 = vmatprep.subr.bf16.mxu0 0
        %381 = vmatpush1.bf16.msra.mxu0 0
        %382 = vmatprep.subr.bf16.mxu0 0
        %383 = vmatpush1.bf16.msra.mxu0 0
        %384 = vmatprep.mubr.bf16.mxu0 0
        %385 = vmatmul.mubr.bf16.gmra.mrb[0].mxu0 %v298
        %v386 = vpop.f32.mrb[0].mxu0
        %v387 = vadd.f32 0.0, %v386
        %v388 = vpop.f32.mrb[0].mxu0
        %v389 = vpop.f32.mrb[0].mxu0
        %v390 = vadd.f32 0.0, %v389
        %v391 = vpop.f32.mrb[0].mxu0
        %392 = vmatprep.mubr.bf16.mxu0 0
        %393 = vmatmul.mubr.bf16.gmra.mrb[0].mxu0 %v301
        %v394 = vpop.f32.mrb[0].mxu0
        %v395 = vadd.f32 0.0, %v394
        %v396 = vpop.f32.mrb[0].mxu0
        %v397 = vpop.f32.mrb[0].mxu0
        %v398 = vadd.f32 0.0, %v397
        %v399 = vpop.f32.mrb[0].mxu0
        %400 = vmatprep.mubr.bf16.mxu0 0
        %401 = vmatmul.mubr.bf16.gmra.mrb[0].mxu0 %v304
        %v402 = vpop.f32.mrb[0].mxu0
        %v403 = vadd.f32 0.0, %v402
        %v404 = vpop.f32.mrb[0].mxu0
        %v405 = vpop.f32.mrb[0].mxu0
        %v406 = vadd.f32 0.0, %v405
        %v407 = vpop.f32.mrb[0].mxu0
        %408 = vmatprep.mubr.bf16.mxu0 0
        %409 = vmatmul.mubr.bf16.gmra.mrb[0].mxu0 %v307
        %v410 = vpop.f32.mrb[0].mxu0
        %v411 = vadd.f32 0.0, %v410
        %v412 = vpop.f32.mrb[0].mxu0
        %v413 = vpop.f32.mrb[0].mxu0
        %v414 = vadd.f32 0.0, %v413
        %v415 = vpop.f32.mrb[0].mxu0
        %416 = vmatprep.mubr.bf16.mxu0 0
        %417 = vmatmul.mubr.bf16.gmra.mrb[0].mxu0 %v310
        %v418 = vpop.f32.mrb[0].mxu0
        %v419 = vadd.f32 0.0, %v418
        %v420 = vpop.f32.mrb[0].mxu0
        %v421 = vpop.f32.mrb[0].mxu0
        %v422 = vadd.f32 0.0, %v421
        %v423 = vpop.f32.mrb[0].mxu0
        %424 = vmatprep.mubr.bf16.mxu0 0
        %425 = vmatmul.mubr.bf16.gmra.mrb[0].mxu0 %v313
        %v426 = vpop.f32.mrb[0].mxu0
        %v427 = vadd.f32 0.0, %v426
        %v428 = vpop.f32.mrb[0].mxu0
        %v429 = vpop.f32.mrb[0].mxu0
        %v430 = vadd.f32 0.0, %v429
        %v431 = vpop.f32.mrb[0].mxu0
        %432 = vmatprep.mubr.bf16.mxu0 0
        %433 = vmatmul.mubr.bf16.gmra.mrb[0].mxu0 %v316
        %v434 = vpop.f32.mrb[0].mxu0
        %v435 = vadd.f32 0.0, %v434
        %v436 = vpop.f32.mrb[0].mxu0
        %v437 = vpop.f32.mrb[0].mxu0
        %v438 = vadd.f32 0.0, %v437
        %v439 = vpop.f32.mrb[0].mxu0
        %440 = vmatprep.mubr.bf16.mxu0 0
        %441 = vmatmul.mubr.bf16.gmra.mrb[0].mxu0 %v319
        %v442 = vpop.f32.mrb[0].mxu0
        %v443 = vadd.f32 0.0, %v442
        %v444 = vpop.f32.mrb[0].mxu0
        %v445 = vpop.f32.mrb[0].mxu0
        %v446 = vadd.f32 0.0, %v445
        %v447 = vpop.f32.mrb[0].mxu0
        %448 = vmatprep.mubr.bf16.mxu0 0
        %449 = vmatmul.mubr.bf16.gmra.mrb[0].mxu0 %v322
        %v450 = vpop.f32.mrb[0].mxu0
        %v451 = vadd.f32 0.0, %v450
        %v452 = vpop.f32.mrb[0].mxu0
        %v453 = vpop.f32.mrb[0].mxu0
        %v454 = vadd.f32 0.0, %v453
        %v455 = vpop.f32.mrb[0].mxu0
        %456 = vmatprep.mubr.bf16.mxu0 0
        %457 = vmatmul.mubr.bf16.gmra.mrb[0].mxu0 %v325
        %v458 = vpop.f32.mrb[0].mxu0
        %v459 = vadd.f32 0.0, %v458
        %v460 = vpop.f32.mrb[0].mxu0
        %v461 = vpop.f32.mrb[0].mxu0
        %v462 = vadd.f32 0.0, %v461
        %v463 = vpop.f32.mrb[0].mxu0
        %464 = vmatprep.mubr.bf16.mxu0 0
        %465 = vmatmul.mubr.bf16.gmra.mrb[0].mxu0 %v328
        %v466 = vpop.f32.mrb[0].mxu0
        %v467 = vadd.f32 0.0, %v466
        %v468 = vpop.f32.mrb[0].mxu0
        %v469 = vpop.f32.mrb[0].mxu0
        %v470 = vadd.f32 0.0, %v469
        %v471 = vpop.f32.mrb[0].mxu0
        %472 = vmatprep.mubr.bf16.mxu0 0
        %473 = vmatmul.mubr.bf16.gmra.mrb[0].mxu0 %v331
        %v474 = vpop.f32.mrb[0].mxu0
        %v475 = vadd.f32 0.0, %v474
        %v476 = vpop.f32.mrb[0].mxu0
        %v477 = vpop.f32.mrb[0].mxu0
        %v478 = vadd.f32 0.0, %v477
        %v479 = vpop.f32.mrb[0].mxu0
        %480 = vmatprep.mubr.bf16.mxu0 0
        %481 = vmatmul.mubr.bf16.gmra.mrb[0].mxu0 %v334
        %v482 = vpop.f32.mrb[0].mxu0
        %v483 = vadd.f32 0.0, %v482
        %v484 = vpop.f32.mrb[0].mxu0
        %v485 = vpop.f32.mrb[0].mxu0
        %v486 = vadd.f32 0.0, %v485
        %v487 = vpop.f32.mrb[0].mxu0
        %488 = vmatprep.mubr.bf16.mxu0 0
        %489 = vmatmul.mubr.bf16.gmra.mrb[0].mxu0 %v337
        %v490 = vpop.f32.mrb[0].mxu0
        %v491 = vadd.f32 0.0, %v490
        %v492 = vpop.f32.mrb[0].mxu0
        %v493 = vpop.f32.mrb[0].mxu0
        %v494 = vadd.f32 0.0, %v493
        %v495 = vpop.f32.mrb[0].mxu0
        %496 = vmatprep.mubr.bf16.mxu0 0
        %497 = vmatmul.mubr.bf16.gmra.mrb[0].mxu0 %v340
        %v498 = vpop.f32.mrb[0].mxu0
        %v499 = vadd.f32 0.0, %v498
        %v500 = vpop.f32.mrb[0].mxu0
        %v501 = vpop.f32.mrb[0].mxu0
        %v502 = vadd.f32 0.0, %v501
        %v503 = vpop.f32.mrb[0].mxu0
        %504 = vmatprep.mubr.bf16.mxu0 0
        %505 = vmatmul.mubr.bf16.gmra.mrb[0].mxu0 %v343
        %v506 = vpop.f32.mrb[0].mxu0
        %v507 = vadd.f32 0.0, %v506
        %v508 = vpop.f32.mrb[0].mxu0
        %v509 = vpop.f32.mrb[0].mxu0
        %v510 = vadd.f32 0.0, %v509
        %v511 = vpop.f32.mrb[0].mxu0
        %512 = vmatprep.mubr.bf16.mxu0 0
        %513 = vmatmul.mubr.bf16.gmra.mrb[0].mxu0 %v346
        %v514 = vpop.f32.mrb[0].mxu0
        %v515 = vadd.f32 0.0, %v514
        %v516 = vpop.f32.mrb[0].mxu0
        %v517 = vpop.f32.mrb[0].mxu0
        %v518 = vadd.f32 0.0, %v517
        %v519 = vpop.f32.mrb[0].mxu0
        %520 = vdwg.mxu0
        %521 = vst [vmem:[#allocation2] sm:$0xff] %v387
        %522 = vst [vmem:[#allocation2 + $0x8] sm:$0xff] %v390
        %523 = vst [vmem:[#allocation2 + $0x10] sm:$0xff] %v395
        %524 = vst [vmem:[#allocation2 + $0x18] sm:$0xff] %v398
        %525 = vst [vmem:[#allocation2 + $0x20] sm:$0xff] %v403
        %526 = vst [vmem:[#allocation2 + $0x28] sm:$0xff] %v406
        %527 = vst [vmem:[#allocation2 + $0x30] sm:$0xff] %v411
        %528 = vst [vmem:[#allocation2 + $0x38] sm:$0xff] %v414
        %529 = vst [vmem:[#allocation2 + $0x40] sm:$0xff] %v419
        %530 = vst [vmem:[#allocation2 + $0x48] sm:$0xff] %v422
        %531 = vst [vmem:[#allocation2 + $0x50] sm:$0xff] %v427
        %532 = vst [vmem:[#allocation2 + $0x58] sm:$0xff] %v430
        %533 = vst [vmem:[#allocation2 + $0x60] sm:$0xff] %v435
        %534 = vst [vmem:[#allocation2 + $0x68] sm:$0xff] %v438
        %535 = vst [vmem:[#allocation2 + $0x70] sm:$0xff] %v443
        %536 = vst [vmem:[#allocation2 + $0x78] sm:$0xff] %v446
        %537 = vst [vmem:[#allocation2 + $0x80] sm:$0xff] %v451
        %538 = vst [vmem:[#allocation2 + $0x88] sm:$0xff] %v454
        %539 = vst [vmem:[#allocation2 + $0x90] sm:$0xff] %v459
        %540 = vst [vmem:[#allocation2 + $0x98] sm:$0xff] %v462
        %541 = vst [vmem:[#allocation2 + $0xa0] sm:$0xff] %v467
        %542 = vst [vmem:[#allocation2 + $0xa8] sm:$0xff] %v470
        %543 = vst [vmem:[#allocation2 + $0xb0] sm:$0xff] %v475
        %544 = vst [vmem:[#allocation2 + $0xb8] sm:$0xff] %v478
        %545 = vst [vmem:[#allocation2 + $0xc0] sm:$0xff] %v483
        %546 = vst [vmem:[#allocation2 + $0xc8] sm:$0xff] %v486
        %547 = vst [vmem:[#allocation2 + $0xd0] sm:$0xff] %v491
        %548 = vst [vmem:[#allocation2 + $0xd8] sm:$0xff] %v494
        %549 = vst [vmem:[#allocation2 + $0xe0] sm:$0xff] %v499
        %550 = vst [vmem:[#allocation2 + $0xe8] sm:$0xff] %v502
        %551 = vst [vmem:[#allocation2 + $0xf0] sm:$0xff] %v507
        %552 = vst [vmem:[#allocation2 + $0xf8] sm:$0xff] %v510
        %553 = vst [vmem:[#allocation2 + $0x100] sm:$0xff] %v515
        %554 = vst [vmem:[#allocation2 + $0x108] sm:$0xff] %v518
        %v555 = vld [vmem:[%s168] sm:$0xf]
        %v556 = vld [vmem:[%s168 + $0x4] sm:$0xf]
        %v557 = vld [vmem:[%s168 + $0x8] sm:$0xf]
        %v558 = vld [vmem:[%s168 + $0xc] sm:$0xf]
        %v559 = vld [vmem:[%s168 + $0x10] sm:$0xf]
        %v560 = vld [vmem:[%s168 + $0x14] sm:$0xf]
        %v561 = vld [vmem:[%s168 + $0x18] sm:$0xf]
        %v562 = vld [vmem:[%s168 + $0x1c] sm:$0xf]
        %v563 = vld [vmem:[%s168 + $0x20] sm:$0xf]
        %v564 = vld [vmem:[%s168 + $0x24] sm:$0xf]
        %v565 = vld [vmem:[%s168 + $0x28] sm:$0xf]
        %v566 = vld [vmem:[%s168 + $0x2c] sm:$0xf]
        %v567 = vld [vmem:[%s168 + $0x30] sm:$0xf]
        %v568 = vld [vmem:[%s168 + $0x34] sm:$0xf]
        %v569 = vld [vmem:[%s168 + $0x38] sm:$0xf]
        %v570 = vld [vmem:[%s168 + $0x3c] sm:$0xf]
        %v571 = vld [vmem:[%s168 + $0x40] sm:$0xf]
        %v572 = vld [vmem:[%s168 + $0x44] sm:$0xf]
        %v573 = vld [vmem:[%s168 + $0x48] sm:$0xf]
        %v574 = vld [vmem:[%s168 + $0x4c] sm:$0xf]
        %v575 = vld [vmem:[%s168 + $0x50] sm:$0xf]
        %v576 = vld [vmem:[%s168 + $0x54] sm:$0xf]
        %v577 = vld [vmem:[%s168 + $0x58] sm:$0xf]
        %v578 = vld [vmem:[%s168 + $0x5c] sm:$0xf]
        %v579 = vld [vmem:[%s168 + $0x60] sm:$0xf]
        %v580 = vld [vmem:[%s168 + $0x64] sm:$0xf]
        %v581 = vld [vmem:[%s168 + $0x68] sm:$0xf]
        %v582 = vld [vmem:[%s168 + $0x6c] sm:$0xf]
        %v583 = vld [vmem:[%s168 + $0x70] sm:$0xf]
        %v584 = vld [vmem:[%s168 + $0x74] sm:$0xf]
        %v585 = vld [vmem:[%s168 + $0x78] sm:$0xf]
        %v586 = vld [vmem:[%s168 + $0x7c] sm:$0xf]
        %v587 = vld [vmem:[%s168 + $0x80] sm:$0xf]
        %v588 = vld [vmem:[%s168 + $0x84] sm:$0xf]
        %v589 = vld [vmem:[%s168 + $0x88] sm:$0x1]
        %s590 = scalar_lea.vmem %s1, 8
        %v591 = vld [vmem:[%s590] sm:$0xf]
        %v592 = vld [vmem:[%s590 + $0x4] sm:$0x3]
        %v628 = vunpack.c.l.b16 %v555
        %v629 = vunpack.c.l.b16 %v556
        %v630 = vunpack.c.l.b16 %v557
        %v631 = vunpack.c.l.b16 %v558
        %v632 = vunpack.c.l.b16 %v559
        %v633 = vunpack.c.l.b16 %v560
        %v634 = vunpack.c.l.b16 %v561
        %v635 = vunpack.c.l.b16 %v562
        %v636 = vunpack.c.l.b16 %v563
        %v637 = vunpack.c.l.b16 %v564
        %v638 = vunpack.c.l.b16 %v565
        %v639 = vunpack.c.l.b16 %v566
        %v640 = vunpack.c.l.b16 %v567
        %v641 = vunpack.c.l.b16 %v568
        %v642 = vunpack.c.l.b16 %v569
        %v643 = vunpack.c.l.b16 %v570
        %v644 = vunpack.c.l.b16 %v571
        %v645 = vunpack.c.l.b16 %v572
        %v646 = vunpack.c.l.b16 %v573
        %v647 = vunpack.c.l.b16 %v574
        %v648 = vunpack.c.l.b16 %v575
        %v649 = vunpack.c.l.b16 %v576
        %v650 = vunpack.c.l.b16 %v577
        %v651 = vunpack.c.l.b16 %v578
        %v652 = vunpack.c.l.b16 %v579
        %v653 = vunpack.c.l.b16 %v580
        %v654 = vunpack.c.l.b16 %v581
        %v655 = vunpack.c.l.b16 %v582
        %v656 = vunpack.c.l.b16 %v583
        %v657 = vunpack.c.l.b16 %v584
        %v658 = vunpack.c.l.b16 %v585
        %v659 = vunpack.c.l.b16 %v586
        %v660 = vunpack.c.l.b16 %v587
        %v661 = vunpack.c.l.b16 %v588
        %v662 = vunpack.c.l.b16 %v589
        %v663 = vpack.c.b16 %v629, %v628
        %v664 = vpack.c.b16 %v631, %v630
        %v665 = vpack.c.b16 %v633, %v632
        %v666 = vpack.c.b16 %v635, %v634
        %v667 = vpack.c.b16 %v637, %v636
        %v668 = vpack.c.b16 %v639, %v638
        %v669 = vpack.c.b16 %v641, %v640
        %v670 = vpack.c.b16 %v643, %v642
        %v671 = vpack.c.b16 %v645, %v644
        %v672 = vpack.c.b16 %v647, %v646
        %v673 = vpack.c.b16 %v649, %v648
        %v674 = vpack.c.b16 %v651, %v650
        %v675 = vpack.c.b16 %v653, %v652
        %v676 = vpack.c.b16 %v655, %v654
        %v677 = vpack.c.b16 %v657, %v656
        %v678 = vpack.c.b16 %v659, %v658
        %v679 = vpack.c.b16 %v661, %v660
        %v680 = vpack.c.b16 %v662, %v662
        %vm681 = vsmask.f32 7424
        %v683 = vshrl.u32 %v663, 16
        %v685 = vshll.u32 %v663, 16
        %v687 = vrot.slane %v685, 1
        %v688 = vor.u32 %v683, %v687
        %v690 = vshll.u32 %v664, 16
        %v692 = vrot.slane %v690, 1
        %v693 = vsel %vm681, %v688, %v692
        %v694 = vshrl.u32 %v664, 16
        %v696 = vor.u32 %v694, %v692
        %v698 = vshll.u32 %v665, 16
        %v700 = vrot.slane %v698, 1
        %v701 = vsel %vm681, %v696, %v700
        %v702 = vshrl.u32 %v665, 16
        %v704 = vor.u32 %v702, %v700
        %v706 = vshll.u32 %v666, 16
        %v708 = vrot.slane %v706, 1
        %v709 = vsel %vm681, %v704, %v708
        %v710 = vshrl.u32 %v666, 16
        %v712 = vor.u32 %v710, %v708
        %v714 = vshll.u32 %v667, 16
        %v716 = vrot.slane %v714, 1
        %v717 = vsel %vm681, %v712, %v716
        %v718 = vshrl.u32 %v667, 16
        %v720 = vor.u32 %v718, %v716
        %v722 = vshll.u32 %v668, 16
        %v724 = vrot.slane %v722, 1
        %v725 = vsel %vm681, %v720, %v724
        %v726 = vshrl.u32 %v668, 16
        %v728 = vor.u32 %v726, %v724
        %v730 = vshll.u32 %v669, 16
        %v732 = vrot.slane %v730, 1
        %v733 = vsel %vm681, %v728, %v732
        %v734 = vshrl.u32 %v669, 16
        %v736 = vor.u32 %v734, %v732
        %v738 = vshll.u32 %v670, 16
        %v740 = vrot.slane %v738, 1
        %v741 = vsel %vm681, %v736, %v740
        %v742 = vshrl.u32 %v670, 16
        %v744 = vor.u32 %v742, %v740
        %v746 = vshll.u32 %v671, 16
        %v748 = vrot.slane %v746, 1
        %v749 = vsel %vm681, %v744, %v748
        %v750 = vshrl.u32 %v671, 16
        %v752 = vor.u32 %v750, %v748
        %v754 = vshll.u32 %v672, 16
        %v756 = vrot.slane %v754, 1
        %v757 = vsel %vm681, %v752, %v756
        %v758 = vshrl.u32 %v672, 16
        %v760 = vor.u32 %v758, %v756
        %v762 = vshll.u32 %v673, 16
        %v764 = vrot.slane %v762, 1
        %v765 = vsel %vm681, %v760, %v764
        %v766 = vshrl.u32 %v673, 16
        %v768 = vor.u32 %v766, %v764
        %v770 = vshll.u32 %v674, 16
        %v772 = vrot.slane %v770, 1
        %v773 = vsel %vm681, %v768, %v772
        %v774 = vshrl.u32 %v674, 16
        %v776 = vor.u32 %v774, %v772
        %v778 = vshll.u32 %v675, 16
        %v780 = vrot.slane %v778, 1
        %v781 = vsel %vm681, %v776, %v780
        %v782 = vshrl.u32 %v675, 16
        %v784 = vor.u32 %v782, %v780
        %v786 = vshll.u32 %v676, 16
        %v788 = vrot.slane %v786, 1
        %v789 = vsel %vm681, %v784, %v788
        %v790 = vshrl.u32 %v676, 16
        %v792 = vor.u32 %v790, %v788
        %v794 = vshll.u32 %v677, 16
        %v796 = vrot.slane %v794, 1
        %v797 = vsel %vm681, %v792, %v796
        %v798 = vshrl.u32 %v677, 16
        %v800 = vor.u32 %v798, %v796
        %v802 = vshll.u32 %v678, 16
        %v804 = vrot.slane %v802, 1
        %v805 = vsel %vm681, %v800, %v804
        %v806 = vshrl.u32 %v678, 16
        %v808 = vor.u32 %v806, %v804
        %v810 = vshll.u32 %v679, 16
        %v812 = vrot.slane %v810, 1
        %v813 = vsel %vm681, %v808, %v812
        %v814 = vshrl.u32 %v679, 16
        %v816 = vor.u32 %v814, %v812
        %v818 = vshll.u32 %v680, 16
        %v820 = vrot.slane %v818, 1
        %v821 = vsel %vm681, %v816, %v820
        %v824 = vunpack.c.l.b16 %v591
        %v825 = vunpack.c.l.b16 %v592
        %v826 = vpack.c.b16 %v825, %v824
        %v828 = vsel %vm296, %v693, 0
        %v831 = vsel %vm296, %v701, 0
        %v834 = vsel %vm296, %v709, 0
        %v837 = vsel %vm296, %v717, 0
        %v840 = vsel %vm296, %v725, 0
        %v843 = vsel %vm296, %v733, 0
        %v846 = vsel %vm296, %v741, 0
        %v849 = vsel %vm296, %v749, 0
        %v852 = vsel %vm296, %v757, 0
        %v855 = vsel %vm296, %v765, 0
        %v858 = vsel %vm296, %v773, 0
        %v861 = vsel %vm296, %v781, 0
        %v864 = vsel %vm296, %v789, 0
        %v867 = vsel %vm296, %v797, 0
        %v870 = vsel %vm296, %v805, 0
        %v873 = vsel %vm296, %v813, 0
        %v876 = vsel %vm296, %v821, 0
        %v879 = vsel %vm348, %v826, 0
        %881 = vmatprep.subr.bf16.mxu0 0
        %882 = vmatpush1.bf16.msra.mxu0 %v879
        %883 = vmatprep.subr.bf16.mxu0 0
        %884 = vmatpush1.bf16.msra.mxu0 0
        %885 = vmatprep.subr.bf16.mxu0 0
        %886 = vmatpush1.bf16.msra.mxu0 0
        %887 = vmatprep.subr.bf16.mxu0 0
        %888 = vmatpush1.bf16.msra.mxu0 0
        %889 = vmatprep.subr.bf16.mxu0 0
        %890 = vmatpush1.bf16.msra.mxu0 0
        %891 = vmatprep.subr.bf16.mxu0 0
        %892 = vmatpush1.bf16.msra.mxu0 0
        %893 = vmatprep.subr.bf16.mxu0 0
        %894 = vmatpush1.bf16.msra.mxu0 0
        %895 = vmatprep.subr.bf16.mxu0 0
        %896 = vmatpush1.bf16.msra.mxu0 0
        %897 = vmatprep.subr.bf16.mxu0 0
        %898 = vmatpush1.bf16.msra.mxu0 0
        %899 = vmatprep.subr.bf16.mxu0 0
        %900 = vmatpush1.bf16.msra.mxu0 0
        %901 = vmatprep.subr.bf16.mxu0 0
        %902 = vmatpush1.bf16.msra.mxu0 0
        %903 = vmatprep.subr.bf16.mxu0 0
        %904 = vmatpush1.bf16.msra.mxu0 0
        %905 = vmatprep.subr.bf16.mxu0 0
        %906 = vmatpush1.bf16.msra.mxu0 0
        %907 = vmatprep.subr.bf16.mxu0 0
        %908 = vmatpush1.bf16.msra.mxu0 0
        %909 = vmatprep.subr.bf16.mxu0 0
        %910 = vmatpush1.bf16.msra.mxu0 0
        %911 = vmatprep.subr.bf16.mxu0 0
        %912 = vmatpush1.bf16.msra.mxu0 0
        %913 = vmatprep.mubr.bf16.mxu0 0
        %914 = vmatmul.mubr.bf16.gmra.mrb[0].mxu0 %v828
        %v915 = vpop.f32.mrb[0].mxu0
        %v916 = vadd.f32 0.0, %v915
        %v917 = vpop.f32.mrb[0].mxu0
        %v918 = vpop.f32.mrb[0].mxu0
        %v919 = vadd.f32 0.0, %v918
        %v920 = vpop.f32.mrb[0].mxu0
        %921 = vmatprep.mubr.bf16.mxu0 0
        %922 = vmatmul.mubr.bf16.gmra.mrb[0].mxu0 %v831
        %v923 = vpop.f32.mrb[0].mxu0
        %v924 = vadd.f32 0.0, %v923
        %v925 = vpop.f32.mrb[0].mxu0
        %v926 = vpop.f32.mrb[0].mxu0
        %v927 = vadd.f32 0.0, %v926
        %v928 = vpop.f32.mrb[0].mxu0
        %929 = vmatprep.mubr.bf16.mxu0 0
        %930 = vmatmul.mubr.bf16.gmra.mrb[0].mxu0 %v834
        %v931 = vpop.f32.mrb[0].mxu0
        %v932 = vadd.f32 0.0, %v931
        %v933 = vpop.f32.mrb[0].mxu0
        %v934 = vpop.f32.mrb[0].mxu0
        %v935 = vadd.f32 0.0, %v934
        %v936 = vpop.f32.mrb[0].mxu0
        %937 = vmatprep.mubr.bf16.mxu0 0
        %938 = vmatmul.mubr.bf16.gmra.mrb[0].mxu0 %v837
        %v939 = vpop.f32.mrb[0].mxu0
        %v940 = vadd.f32 0.0, %v939
        %v941 = vpop.f32.mrb[0].mxu0
        %v942 = vpop.f32.mrb[0].mxu0
        %v943 = vadd.f32 0.0, %v942
        %v944 = vpop.f32.mrb[0].mxu0
        %945 = vmatprep.mubr.bf16.mxu0 0
        %946 = vmatmul.mubr.bf16.gmra.mrb[0].mxu0 %v840
        %v947 = vpop.f32.mrb[0].mxu0
        %v948 = vadd.f32 0.0, %v947
        %v949 = vpop.f32.mrb[0].mxu0
        %v950 = vpop.f32.mrb[0].mxu0
        %v951 = vadd.f32 0.0, %v950
        %v952 = vpop.f32.mrb[0].mxu0
        %953 = vmatprep.mubr.bf16.mxu0 0
        %954 = vmatmul.mubr.bf16.gmra.mrb[0].mxu0 %v843
        %v955 = vpop.f32.mrb[0].mxu0
        %v956 = vadd.f32 0.0, %v955
        %v957 = vpop.f32.mrb[0].mxu0
        %v958 = vpop.f32.mrb[0].mxu0
        %v959 = vadd.f32 0.0, %v958
        %v960 = vpop.f32.mrb[0].mxu0
        %961 = vmatprep.mubr.bf16.mxu0 0
        %962 = vmatmul.mubr.bf16.gmra.mrb[0].mxu0 %v846
        %v963 = vpop.f32.mrb[0].mxu0
        %v964 = vadd.f32 0.0, %v963
        %v965 = vpop.f32.mrb[0].mxu0
        %v966 = vpop.f32.mrb[0].mxu0
        %v967 = vadd.f32 0.0, %v966
        %v968 = vpop.f32.mrb[0].mxu0
        %969 = vmatprep.mubr.bf16.mxu0 0
        %970 = vmatmul.mubr.bf16.gmra.mrb[0].mxu0 %v849
        %v971 = vpop.f32.mrb[0].mxu0
        %v972 = vadd.f32 0.0, %v971
        %v973 = vpop.f32.mrb[0].mxu0
        %v974 = vpop.f32.mrb[0].mxu0
        %v975 = vadd.f32 0.0, %v974
        %v976 = vpop.f32.mrb[0].mxu0
        %977 = vmatprep.mubr.bf16.mxu0 0
        %978 = vmatmul.mubr.bf16.gmra.mrb[0].mxu0 %v852
        %v979 = vpop.f32.mrb[0].mxu0
        %v980 = vadd.f32 0.0, %v979
        %v981 = vpop.f32.mrb[0].mxu0
        %v982 = vpop.f32.mrb[0].mxu0
        %v983 = vadd.f32 0.0, %v982
        %v984 = vpop.f32.mrb[0].mxu0
        %985 = vmatprep.mubr.bf16.mxu0 0
        %986 = vmatmul.mubr.bf16.gmra.mrb[0].mxu0 %v855
        %v987 = vpop.f32.mrb[0].mxu0
        %v988 = vadd.f32 0.0, %v987
        %v989 = vpop.f32.mrb[0].mxu0
        %v990 = vpop.f32.mrb[0].mxu0
        %v991 = vadd.f32 0.0, %v990
        %v992 = vpop.f32.mrb[0].mxu0
        %993 = vmatprep.mubr.bf16.mxu0 0
        %994 = vmatmul.mubr.bf16.gmra.mrb[0].mxu0 %v858
        %v995 = vpop.f32.mrb[0].mxu0
        %v996 = vadd.f32 0.0, %v995
        %v997 = vpop.f32.mrb[0].mxu0
        %v998 = vpop.f32.mrb[0].mxu0
        %v999 = vadd.f32 0.0, %v998
        %v1000 = vpop.f32.mrb[0].mxu0
        %1001 = vmatprep.mubr.bf16.mxu0 0
        %1002 = vmatmul.mubr.bf16.gmra.mrb[0].mxu0 %v861
        %v1003 = vpop.f32.mrb[0].mxu0
        %v1004 = vadd.f32 0.0, %v1003
        %v1005 = vpop.f32.mrb[0].mxu0
        %v1006 = vpop.f32.mrb[0].mxu0
        %v1007 = vadd.f32 0.0, %v1006
        %v1008 = vpop.f32.mrb[0].mxu0
        %1009 = vmatprep.mubr.bf16.mxu0 0
        %1010 = vmatmul.mubr.bf16.gmra.mrb[0].mxu0 %v864
        %v1011 = vpop.f32.mrb[0].mxu0
        %v1012 = vadd.f32 0.0, %v1011
        %v1013 = vpop.f32.mrb[0].mxu0
        %v1014 = vpop.f32.mrb[0].mxu0
        %v1015 = vadd.f32 0.0, %v1014
        %v1016 = vpop.f32.mrb[0].mxu0
        %1017 = vmatprep.mubr.bf16.mxu0 0
        %1018 = vmatmul.mubr.bf16.gmra.mrb[0].mxu0 %v867
        %v1019 = vpop.f32.mrb[0].mxu0
        %v1020 = vadd.f32 0.0, %v1019
        %v1021 = vpop.f32.mrb[0].mxu0
        %v1022 = vpop.f32.mrb[0].mxu0
        %v1023 = vadd.f32 0.0, %v1022
        %v1024 = vpop.f32.mrb[0].mxu0
        %1025 = vmatprep.mubr.bf16.mxu0 0
        %1026 = vmatmul.mubr.bf16.gmra.mrb[0].mxu0 %v870
        %v1027 = vpop.f32.mrb[0].mxu0
        %v1028 = vadd.f32 0.0, %v1027
        %v1029 = vpop.f32.mrb[0].mxu0
        %v1030 = vpop.f32.mrb[0].mxu0
        %v1031 = vadd.f32 0.0, %v1030
        %v1032 = vpop.f32.mrb[0].mxu0
        %1033 = vmatprep.mubr.bf16.mxu0 0
        %1034 = vmatmul.mubr.bf16.gmra.mrb[0].mxu0 %v873
        %v1035 = vpop.f32.mrb[0].mxu0
        %v1036 = vadd.f32 0.0, %v1035
        %v1037 = vpop.f32.mrb[0].mxu0
        %v1038 = vpop.f32.mrb[0].mxu0
        %v1039 = vadd.f32 0.0, %v1038
        %v1040 = vpop.f32.mrb[0].mxu0
        %1041 = vmatprep.mubr.bf16.mxu0 0
        %1042 = vmatmul.mubr.bf16.gmra.mrb[0].mxu0 %v876
        %v1043 = vpop.f32.mrb[0].mxu0
        %v1044 = vadd.f32 0.0, %v1043
        %v1045 = vpop.f32.mrb[0].mxu0
        %v1046 = vpop.f32.mrb[0].mxu0
        %v1047 = vadd.f32 0.0, %v1046
        %v1048 = vpop.f32.mrb[0].mxu0
        %1049 = vdwg.mxu0
        %v1050 = vld [vmem:[#allocation2] sm:$0xff]
        %v1051 = vld [vmem:[#allocation2 + $0x8] sm:$0xff]
        %v1052 = vld [vmem:[#allocation2 + $0x10] sm:$0xff]
        %v1053 = vld [vmem:[#allocation2 + $0x18] sm:$0xff]
        %v1054 = vld [vmem:[#allocation2 + $0x20] sm:$0xff]
        %v1055 = vld [vmem:[#allocation2 + $0x28] sm:$0xff]
        %v1056 = vld [vmem:[#allocation2 + $0x30] sm:$0xff]
        %v1057 = vld [vmem:[#allocation2 + $0x38] sm:$0xff]
        %v1058 = vld [vmem:[#allocation2 + $0x40] sm:$0xff]
        %v1059 = vld [vmem:[#allocation2 + $0x48] sm:$0xff]
        %v1060 = vld [vmem:[#allocation2 + $0x50] sm:$0xff]
        %v1061 = vld [vmem:[#allocation2 + $0x58] sm:$0xff]
        %v1062 = vld [vmem:[#allocation2 + $0x60] sm:$0xff]
        %v1063 = vld [vmem:[#allocation2 + $0x68] sm:$0xff]
        %v1064 = vld [vmem:[#allocation2 + $0x70] sm:$0xff]
        %v1065 = vld [vmem:[#allocation2 + $0x78] sm:$0xff]
        %v1066 = vld [vmem:[#allocation2 + $0x80] sm:$0xff]
        %v1067 = vld [vmem:[#allocation2 + $0x88] sm:$0xff]
        %v1068 = vld [vmem:[#allocation2 + $0x90] sm:$0xff]
        %v1069 = vld [vmem:[#allocation2 + $0x98] sm:$0xff]
        %v1070 = vld [vmem:[#allocation2 + $0xa0] sm:$0xff]
        %v1071 = vld [vmem:[#allocation2 + $0xa8] sm:$0xff]
        %v1072 = vld [vmem:[#allocation2 + $0xb0] sm:$0xff]
        %v1073 = vld [vmem:[#allocation2 + $0xb8] sm:$0xff]
        %v1074 = vld [vmem:[#allocation2 + $0xc0] sm:$0xff]
        %v1075 = vld [vmem:[#allocation2 + $0xc8] sm:$0xff]
        %v1076 = vld [vmem:[#allocation2 + $0xd0] sm:$0xff]
        %v1077 = vld [vmem:[#allocation2 + $0xd8] sm:$0xff]
        %v1078 = vld [vmem:[#allocation2 + $0xe0] sm:$0xff]
        %v1079 = vld [vmem:[#allocation2 + $0xe8] sm:$0xff]
        %v1080 = vld [vmem:[#allocation2 + $0xf0] sm:$0xff]
        %v1081 = vld [vmem:[#allocation2 + $0xf8] sm:$0xff]
        %v1082 = vld [vmem:[#allocation2 + $0x100] sm:$0xff]
        %v1083 = vld [vmem:[#allocation2 + $0x108] sm:$0xff]
        %v1084 = vadd.f32 %v1050, %v916
        %v1085 = vadd.f32 %v1051, %v919
        %v1086 = vadd.f32 %v1052, %v924
        %v1087 = vadd.f32 %v1053, %v927
        %v1088 = vadd.f32 %v1054, %v932
        %v1089 = vadd.f32 %v1055, %v935
        %v1090 = vadd.f32 %v1056, %v940
        %v1091 = vadd.f32 %v1057, %v943
        %v1092 = vadd.f32 %v1058, %v948
        %v1093 = vadd.f32 %v1059, %v951
        %v1094 = vadd.f32 %v1060, %v956
        %v1095 = vadd.f32 %v1061, %v959
        %v1096 = vadd.f32 %v1062, %v964
        %v1097 = vadd.f32 %v1063, %v967
        %v1098 = vadd.f32 %v1064, %v972
        %v1099 = vadd.f32 %v1065, %v975
        %v1100 = vadd.f32 %v1066, %v980
        %v1101 = vadd.f32 %v1067, %v983
        %v1102 = vadd.f32 %v1068, %v988
        %v1103 = vadd.f32 %v1069, %v991
        %v1104 = vadd.f32 %v1070, %v996
        %v1105 = vadd.f32 %v1071, %v999
        %v1106 = vadd.f32 %v1072, %v1004
        %v1107 = vadd.f32 %v1073, %v1007
        %v1108 = vadd.f32 %v1074, %v1012
        %v1109 = vadd.f32 %v1075, %v1015
        %v1110 = vadd.f32 %v1076, %v1020
        %v1111 = vadd.f32 %v1077, %v1023
        %v1112 = vadd.f32 %v1078, %v1028
        %v1113 = vadd.f32 %v1079, %v1031
        %v1114 = vadd.f32 %v1080, %v1036
        %v1115 = vadd.f32 %v1081, %v1039
        %v1116 = vadd.f32 %v1082, %v1044
        %v1117 = vadd.f32 %v1083, %v1047
        %1118 = vst [vmem:[#allocation2] sm:$0xff] %v1084
        %1119 = vst [vmem:[#allocation2 + $0x8] sm:$0xff] %v1085
        %1120 = vst [vmem:[#allocation2 + $0x10] sm:$0xff] %v1086
        %1121 = vst [vmem:[#allocation2 + $0x18] sm:$0xff] %v1087
        %1122 = vst [vmem:[#allocation2 + $0x20] sm:$0xff] %v1088
        %1123 = vst [vmem:[#allocation2 + $0x28] sm:$0xff] %v1089
        %1124 = vst [vmem:[#allocation2 + $0x30] sm:$0xff] %v1090
        %1125 = vst [vmem:[#allocation2 + $0x38] sm:$0xff] %v1091
        %1126 = vst [vmem:[#allocation2 + $0x40] sm:$0xff] %v1092
        %1127 = vst [vmem:[#allocation2 + $0x48] sm:$0xff] %v1093
        %1128 = vst [vmem:[#allocation2 + $0x50] sm:$0xff] %v1094
        %1129 = vst [vmem:[#allocation2 + $0x58] sm:$0xff] %v1095
        %1130 = vst [vmem:[#allocation2 + $0x60] sm:$0xff] %v1096
        %1131 = vst [vmem:[#allocation2 + $0x68] sm:$0xff] %v1097
        %1132 = vst [vmem:[#allocation2 + $0x70] sm:$0xff] %v1098
        %1133 = vst [vmem:[#allocation2 + $0x78] sm:$0xff] %v1099
        %1134 = vst [vmem:[#allocation2 + $0x80] sm:$0xff] %v1100
        %1135 = vst [vmem:[#allocation2 + $0x88] sm:$0xff] %v1101
        %1136 = vst [vmem:[#allocation2 + $0x90] sm:$0xff] %v1102
        %1137 = vst [vmem:[#allocation2 + $0x98] sm:$0xff] %v1103
        %1138 = vst [vmem:[#allocation2 + $0xa0] sm:$0xff] %v1104
        %1139 = vst [vmem:[#allocation2 + $0xa8] sm:$0xff] %v1105
        %1140 = vst [vmem:[#allocation2 + $0xb0] sm:$0xff] %v1106
        %1141 = vst [vmem:[#allocation2 + $0xb8] sm:$0xff] %v1107
        %1142 = vst [vmem:[#allocation2 + $0xc0] sm:$0xff] %v1108
        %1143 = vst [vmem:[#allocation2 + $0xc8] sm:$0xff] %v1109
        %1144 = vst [vmem:[#allocation2 + $0xd0] sm:$0xff] %v1110
        %1145 = vst [vmem:[#allocation2 + $0xd8] sm:$0xff] %v1111
        %1146 = vst [vmem:[#allocation2 + $0xe0] sm:$0xff] %v1112
        %1147 = vst [vmem:[#allocation2 + $0xe8] sm:$0xff] %v1113
        %1148 = vst [vmem:[#allocation2 + $0xf0] sm:$0xff] %v1114
        %1149 = vst [vmem:[#allocation2 + $0xf8] sm:$0xff] %v1115
        %1150 = vst [vmem:[#allocation2 + $0x100] sm:$0xff] %v1116
        %1151 = vst [vmem:[#allocation2 + $0x108] sm:$0xff] %v1117
        %v1152 = vld [vmem:[%s168 + $0x8] sm:$0xf]
        %v1153 = vld [vmem:[%s168 + $0xc] sm:$0xf]
        %v1154 = vld [vmem:[%s168 + $0x10] sm:$0xf]
        %v1155 = vld [vmem:[%s168 + $0x14] sm:$0xf]
        %v1156 = vld [vmem:[%s168 + $0x18] sm:$0xf]
        %v1157 = vld [vmem:[%s168 + $0x1c] sm:$0xf]
        %v1158 = vld [vmem:[%s168 + $0x20] sm:$0xf]
        %v1159 = vld [vmem:[%s168 + $0x24] sm:$0xf]
        %v1160 = vld [vmem:[%s168 + $0x28] sm:$0xf]
        %v1161 = vld [vmem:[%s168 + $0x2c] sm:$0xf]
        %v1162 = vld [vmem:[%s168 + $0x30] sm:$0xf]
        %v1163 = vld [vmem:[%s168 + $0x34] sm:$0xf]
        %v1164 = vld [vmem:[%s168 + $0x38] sm:$0xf]
        %v1165 = vld [vmem:[%s168 + $0x3c] sm:$0xf]
        %v1166 = vld [vmem:[%s168 + $0x40] sm:$0xf]
        %v1167 = vld [vmem:[%s168 + $0x44] sm:$0xf]
        %v1168 = vld [vmem:[%s168 + $0x48] sm:$0xf]
        %v1169 = vld [vmem:[%s168 + $0x4c] sm:$0xf]
        %v1170 = vld [vmem:[%s168 + $0x50] sm:$0xf]
        %v1171 = vld [vmem:[%s168 + $0x54] sm:$0xf]
        %v1172 = vld [vmem:[%s168 + $0x58] sm:$0xf]
        %v1173 = vld [vmem:[%s168 + $0x5c] sm:$0xf]
        %v1174 = vld [vmem:[%s168 + $0x60] sm:$0xf]
        %v1175 = vld [vmem:[%s168 + $0x64] sm:$0xf]
        %v1176 = vld [vmem:[%s168 + $0x68] sm:$0xf]
        %v1177 = vld [vmem:[%s168 + $0x6c] sm:$0xf]
        %v1178 = vld [vmem:[%s168 + $0x70] sm:$0xf]
        %v1179 = vld [vmem:[%s168 + $0x74] sm:$0xf]
        %v1180 = vld [vmem:[%s168 + $0x78] sm:$0xf]
        %v1181 = vld [vmem:[%s168 + $0x7c] sm:$0xf]
        %v1182 = vld [vmem:[%s168 + $0x80] sm:$0xf]
        %v1183 = vld [vmem:[%s168 + $0x84] sm:$0xf]
        %v1184 = vld [vmem:[%s168 + $0x88] sm:$0xf]
        %v1185 = vld [vmem:[%s168 + $0x8c] sm:$0xf]
        %v1186 = vld [vmem:[%s168 + $0x90] sm:$0x1]
        %s1187 = scalar_lea.vmem %s1, 16
        %v1188 = vld [vmem:[%s1187] sm:$0xf]
        %v1189 = vld [vmem:[%s1187 + $0x4] sm:$0x3]
        %v1225 = vunpack.c.l.b16 %v1152
        %v1226 = vunpack.c.l.b16 %v1153
        %v1227 = vunpack.c.l.b16 %v1154
        %v1228 = vunpack.c.l.b16 %v1155
        %v1229 = vunpack.c.l.b16 %v1156
        %v1230 = vunpack.c.l.b16 %v1157
        %v1231 = vunpack.c.l.b16 %v1158
        %v1232 = vunpack.c.l.b16 %v1159
        %v1233 = vunpack.c.l.b16 %v1160
        %v1234 = vunpack.c.l.b16 %v1161
        %v1235 = vunpack.c.l.b16 %v1162
        %v1236 = vunpack.c.l.b16 %v1163
        %v1237 = vunpack.c.l.b16 %v1164
        %v1238 = vunpack.c.l.b16 %v1165
        %v1239 = vunpack.c.l.b16 %v1166
        %v1240 = vunpack.c.l.b16 %v1167
        %v1241 = vunpack.c.l.b16 %v1168
        %v1242 = vunpack.c.l.b16 %v1169
        %v1243 = vunpack.c.l.b16 %v1170
        %v1244 = vunpack.c.l.b16 %v1171
        %v1245 = vunpack.c.l.b16 %v1172
        %v1246 = vunpack.c.l.b16 %v1173
        %v1247 = vunpack.c.l.b16 %v1174
        %v1248 = vunpack.c.l.b16 %v1175
        %v1249 = vunpack.c.l.b16 %v1176
        %v1250 = vunpack.c.l.b16 %v1177
        %v1251 = vunpack.c.l.b16 %v1178
        %v1252 = vunpack.c.l.b16 %v1179
        %v1253 = vunpack.c.l.b16 %v1180
        %v1254 = vunpack.c.l.b16 %v1181
        %v1255 = vunpack.c.l.b16 %v1182
        %v1256 = vunpack.c.l.b16 %v1183
        %v1257 = vunpack.c.l.b16 %v1184
        %v1258 = vunpack.c.l.b16 %v1185
        %v1259 = vunpack.c.l.b16 %v1186
        %v1260 = vpack.c.b16 %v1226, %v1225
        %v1261 = vpack.c.b16 %v1228, %v1227
        %v1262 = vpack.c.b16 %v1230, %v1229
        %v1263 = vpack.c.b16 %v1232, %v1231
        %v1264 = vpack.c.b16 %v1234, %v1233
        %v1265 = vpack.c.b16 %v1236, %v1235
        %v1266 = vpack.c.b16 %v1238, %v1237
        %v1267 = vpack.c.b16 %v1240, %v1239
        %v1268 = vpack.c.b16 %v1242, %v1241
        %v1269 = vpack.c.b16 %v1244, %v1243
        %v1270 = vpack.c.b16 %v1246, %v1245
        %v1271 = vpack.c.b16 %v1248, %v1247
        %v1272 = vpack.c.b16 %v1250, %v1249
        %v1273 = vpack.c.b16 %v1252, %v1251
        %v1274 = vpack.c.b16 %v1254, %v1253
        %v1275 = vpack.c.b16 %v1256, %v1255
        %v1276 = vpack.c.b16 %v1258, %v1257
        %v1277 = vpack.c.b16 %v1259, %v1259
        %v1279 = vshrl.u32 %v1260, 16
        %v1281 = vshll.u32 %v1260, 16
        %v1283 = vrot.slane %v1281, 1
        %v1284 = vor.u32 %v1279, %v1283
        %v1286 = vshll.u32 %v1261, 16
        %v1288 = vrot.slane %v1286, 1
        %v1289 = vsel %vm681, %v1284, %v1288
        %v1290 = vshrl.u32 %v1261, 16
        %v1292 = vor.u32 %v1290, %v1288
        %v1294 = vshll.u32 %v1262, 16
        %v1296 = vrot.slane %v1294, 1
        %v1297 = vsel %vm681, %v1292, %v1296
        %v1298 = vshrl.u32 %v1262, 16
        %v1300 = vor.u32 %v1298, %v1296
        %v1302 = vshll.u32 %v1263, 16
        %v1304 = vrot.slane %v1302, 1
        %v1305 = vsel %vm681, %v1300, %v1304
        %v1306 = vshrl.u32 %v1263, 16
        %v1308 = vor.u32 %v1306, %v1304
        %v1310 = vshll.u32 %v1264, 16
        %v1312 = vrot.slane %v1310, 1
        %v1313 = vsel %vm681, %v1308, %v1312
        %v1314 = vshrl.u32 %v1264, 16
        %v1316 = vor.u32 %v1314, %v1312
        %v1318 = vshll.u32 %v1265, 16
        %v1320 = vrot.slane %v1318, 1
        %v1321 = vsel %vm681, %v1316, %v1320
        %v1322 = vshrl.u32 %v1265, 16
        %v1324 = vor.u32 %v1322, %v1320
        %v1326 = vshll.u32 %v1266, 16
        %v1328 = vrot.slane %v1326, 1
        %v1329 = vsel %vm681, %v1324, %v1328
        %v1330 = vshrl.u32 %v1266, 16
        %v1332 = vor.u32 %v1330, %v1328
        %v1334 = vshll.u32 %v1267, 16
        %v1336 = vrot.slane %v1334, 1
        %v1337 = vsel %vm681, %v1332, %v1336
        %v1338 = vshrl.u32 %v1267, 16
        %v1340 = vor.u32 %v1338, %v1336
        %v1342 = vshll.u32 %v1268, 16
        %v1344 = vrot.slane %v1342, 1
        %v1345 = vsel %vm681, %v1340, %v1344
        %v1346 = vshrl.u32 %v1268, 16
        %v1348 = vor.u32 %v1346, %v1344
        %v1350 = vshll.u32 %v1269, 16
        %v1352 = vrot.slane %v1350, 1
        %v1353 = vsel %vm681, %v1348, %v1352
        %v1354 = vshrl.u32 %v1269, 16
        %v1356 = vor.u32 %v1354, %v1352
        %v1358 = vshll.u32 %v1270, 16
        %v1360 = vrot.slane %v1358, 1
        %v1361 = vsel %vm681, %v1356, %v1360
        %v1362 = vshrl.u32 %v1270, 16
        %v1364 = vor.u32 %v1362, %v1360
        %v1366 = vshll.u32 %v1271, 16
        %v1368 = vrot.slane %v1366, 1
        %v1369 = vsel %vm681, %v1364, %v1368
        %v1370 = vshrl.u32 %v1271, 16
        %v1372 = vor.u32 %v1370, %v1368
        %v1374 = vshll.u32 %v1272, 16
        %v1376 = vrot.slane %v1374, 1
        %v1377 = vsel %vm681, %v1372, %v1376
        %v1378 = vshrl.u32 %v1272, 16
        %v1380 = vor.u32 %v1378, %v1376
        %v1382 = vshll.u32 %v1273, 16
        %v1384 = vrot.slane %v1382, 1
        %v1385 = vsel %vm681, %v1380, %v1384
        %v1386 = vshrl.u32 %v1273, 16
        %v1388 = vor.u32 %v1386, %v1384
        %v1390 = vshll.u32 %v1274, 16
        %v1392 = vrot.slane %v1390, 1
        %v1393 = vsel %vm681, %v1388, %v1392
        %v1394 = vshrl.u32 %v1274, 16
        %v1396 = vor.u32 %v1394, %v1392
        %v1398 = vshll.u32 %v1275, 16
        %v1400 = vrot.slane %v1398, 1
        %v1401 = vsel %vm681, %v1396, %v1400
        %v1402 = vshrl.u32 %v1275, 16
        %v1404 = vor.u32 %v1402, %v1400
        %v1406 = vshll.u32 %v1276, 16
        %v1408 = vrot.slane %v1406, 1
        %v1409 = vsel %vm681, %v1404, %v1408
        %v1410 = vshrl.u32 %v1276, 16
        %v1412 = vor.u32 %v1410, %v1408
        %v1414 = vshll.u32 %v1277, 16
        %v1416 = vrot.slane %v1414, 1
        %v1417 = vsel %vm681, %v1412, %v1416
        %v1420 = vunpack.c.l.b16 %v1188
        %v1421 = vunpack.c.l.b16 %v1189
        %v1422 = vpack.c.b16 %v1421, %v1420
        %v1424 = vsel %vm296, %v1289, 0
        %v1427 = vsel %vm296, %v1297, 0
        %v1430 = vsel %vm296, %v1305, 0
        %v1433 = vsel %vm296, %v1313, 0
        %v1436 = vsel %vm296, %v1321, 0
        %v1439 = vsel %vm296, %v1329, 0
        %v1442 = vsel %vm296, %v1337, 0
        %v1445 = vsel %vm296, %v1345, 0
        %v1448 = vsel %vm296, %v1353, 0
        %v1451 = vsel %vm296, %v1361, 0
        %v1454 = vsel %vm296, %v1369, 0
        %v1457 = vsel %vm296, %v1377, 0
        %v1460 = vsel %vm296, %v1385, 0
        %v1463 = vsel %vm296, %v1393, 0
        %v1466 = vsel %vm296, %v1401, 0
        %v1469 = vsel %vm296, %v1409, 0
        %v1472 = vsel %vm296, %v1417, 0
        %v1475 = vsel %vm348, %v1422, 0
        %1477 = vmatprep.subr.bf16.mxu0 0
        %1478 = vmatpush1.bf16.msra.mxu0 %v1475
        %1479 = vmatprep.subr.bf16.mxu0 0
        %1480 = vmatpush1.bf16.msra.mxu0 0
        %1481 = vmatprep.subr.bf16.mxu0 0
        %1482 = vmatpush1.bf16.msra.mxu0 0
        %1483 = vmatprep.subr.bf16.mxu0 0
        %1484 = vmatpush1.bf16.msra.mxu0 0
        %1485 = vmatprep.subr.bf16.mxu0 0
        %1486 = vmatpush1.bf16.msra.mxu0 0
        %1487 = vmatprep.subr.bf16.mxu0 0
        %1488 = vmatpush1.bf16.msra.mxu0 0
        %1489 = vmatprep.subr.bf16.mxu0 0
        %1490 = vmatpush1.bf16.msra.mxu0 0
        %1491 = vmatprep.subr.bf16.mxu0 0
        %1492 = vmatpush1.bf16.msra.mxu0 0
        %1493 = vmatprep.subr.bf16.mxu0 0
        %1494 = vmatpush1.bf16.msra.mxu0 0
        %1495 = vmatprep.subr.bf16.mxu0 0
        %1496 = vmatpush1.bf16.msra.mxu0 0
        %1497 = vmatprep.subr.bf16.mxu0 0
        %1498 = vmatpush1.bf16.msra.mxu0 0
        %1499 = vmatprep.subr.bf16.mxu0 0
        %1500 = vmatpush1.bf16.msra.mxu0 0
        %1501 = vmatprep.subr.bf16.mxu0 0
        %1502 = vmatpush1.bf16.msra.mxu0 0
        %1503 = vmatprep.subr.bf16.mxu0 0
        %1504 = vmatpush1.bf16.msra.mxu0 0
        %1505 = vmatprep.subr.bf16.mxu0 0
        %1506 = vmatpush1.bf16.msra.mxu0 0
        %1507 = vmatprep.subr.bf16.mxu0 0
        %1508 = vmatpush1.bf16.msra.mxu0 0
        %1509 = vmatprep.mubr.bf16.mxu0 0
        %1510 = vmatmul.mubr.bf16.gmra.mrb[0].mxu0 %v1424
        %v1511 = vpop.f32.mrb[0].mxu0
        %v1512 = vadd.f32 0.0, %v1511
        %v1513 = vpop.f32.mrb[0].mxu0
        %v1514 = vpop.f32.mrb[0].mxu0
        %v1515 = vadd.f32 0.0, %v1514
        %v1516 = vpop.f32.mrb[0].mxu0
        %1517 = vmatprep.mubr.bf16.mxu0 0
        %1518 = vmatmul.mubr.bf16.gmra.mrb[0].mxu0 %v1427
        %v1519 = vpop.f32.mrb[0].mxu0
        %v1520 = vadd.f32 0.0, %v1519
        %v1521 = vpop.f32.mrb[0].mxu0
        %v1522 = vpop.f32.mrb[0].mxu0
        %v1523 = vadd.f32 0.0, %v1522
        %v1524 = vpop.f32.mrb[0].mxu0
        %1525 = vmatprep.mubr.bf16.mxu0 0
        %1526 = vmatmul.mubr.bf16.gmra.mrb[0].mxu0 %v1430
        %v1527 = vpop.f32.mrb[0].mxu0
        %v1528 = vadd.f32 0.0, %v1527
        %v1529 = vpop.f32.mrb[0].mxu0
        %v1530 = vpop.f32.mrb[0].mxu0
        %v1531 = vadd.f32 0.0, %v1530
        %v1532 = vpop.f32.mrb[0].mxu0
        %1533 = vmatprep.mubr.bf16.mxu0 0
        %1534 = vmatmul.mubr.bf16.gmra.mrb[0].mxu0 %v1433
        %v1535 = vpop.f32.mrb[0].mxu0
        %v1536 = vadd.f32 0.0, %v1535
        %v1537 = vpop.f32.mrb[0].mxu0
        %v1538 = vpop.f32.mrb[0].mxu0
        %v1539 = vadd.f32 0.0, %v1538
        %v1540 = vpop.f32.mrb[0].mxu0
        %1541 = vmatprep.mubr.bf16.mxu0 0
        %1542 = vmatmul.mubr.bf16.gmra.mrb[0].mxu0 %v1436
        %v1543 = vpop.f32.mrb[0].mxu0
        %v1544 = vadd.f32 0.0, %v1543
        %v1545 = vpop.f32.mrb[0].mxu0
        %v1546 = vpop.f32.mrb[0].mxu0
        %v1547 = vadd.f32 0.0, %v1546
        %v1548 = vpop.f32.mrb[0].mxu0
        %1549 = vmatprep.mubr.bf16.mxu0 0
        %1550 = vmatmul.mubr.bf16.gmra.mrb[0].mxu0 %v1439
        %v1551 = vpop.f32.mrb[0].mxu0
        %v1552 = vadd.f32 0.0, %v1551
        %v1553 = vpop.f32.mrb[0].mxu0
        %v1554 = vpop.f32.mrb[0].mxu0
        %v1555 = vadd.f32 0.0, %v1554
        %v1556 = vpop.f32.mrb[0].mxu0
        %1557 = vmatprep.mubr.bf16.mxu0 0
        %1558 = vmatmul.mubr.bf16.gmra.mrb[0].mxu0 %v1442
        %v1559 = vpop.f32.mrb[0].mxu0
        %v1560 = vadd.f32 0.0, %v1559
        %v1561 = vpop.f32.mrb[0].mxu0
        %v1562 = vpop.f32.mrb[0].mxu0
        %v1563 = vadd.f32 0.0, %v1562
        %v1564 = vpop.f32.mrb[0].mxu0
        %1565 = vmatprep.mubr.bf16.mxu0 0
        %1566 = vmatmul.mubr.bf16.gmra.mrb[0].mxu0 %v1445
        %v1567 = vpop.f32.mrb[0].mxu0
        %v1568 = vadd.f32 0.0, %v1567
        %v1569 = vpop.f32.mrb[0].mxu0
        %v1570 = vpop.f32.mrb[0].mxu0
        %v1571 = vadd.f32 0.0, %v1570
        %v1572 = vpop.f32.mrb[0].mxu0
        %1573 = vmatprep.mubr.bf16.mxu0 0
        %1574 = vmatmul.mubr.bf16.gmra.mrb[0].mxu0 %v1448
        %v1575 = vpop.f32.mrb[0].mxu0
        %v1576 = vadd.f32 0.0, %v1575
        %v1577 = vpop.f32.mrb[0].mxu0
        %v1578 = vpop.f32.mrb[0].mxu0
        %v1579 = vadd.f32 0.0, %v1578
        %v1580 = vpop.f32.mrb[0].mxu0
        %1581 = vmatprep.mubr.bf16.mxu0 0
        %1582 = vmatmul.mubr.bf16.gmra.mrb[0].mxu0 %v1451
        %v1583 = vpop.f32.mrb[0].mxu0
        %v1584 = vadd.f32 0.0, %v1583
        %v1585 = vpop.f32.mrb[0].mxu0
        %v1586 = vpop.f32.mrb[0].mxu0
        %v1587 = vadd.f32 0.0, %v1586
        %v1588 = vpop.f32.mrb[0].mxu0
        %1589 = vmatprep.mubr.bf16.mxu0 0
        %1590 = vmatmul.mubr.bf16.gmra.mrb[0].mxu0 %v1454
        %v1591 = vpop.f32.mrb[0].mxu0
        %v1592 = vadd.f32 0.0, %v1591
        %v1593 = vpop.f32.mrb[0].mxu0
        %v1594 = vpop.f32.mrb[0].mxu0
        %v1595 = vadd.f32 0.0, %v1594
        %v1596 = vpop.f32.mrb[0].mxu0
        %1597 = vmatprep.mubr.bf16.mxu0 0
        %1598 = vmatmul.mubr.bf16.gmra.mrb[0].mxu0 %v1457
        %v1599 = vpop.f32.mrb[0].mxu0
        %v1600 = vadd.f32 0.0, %v1599
        %v1601 = vpop.f32.mrb[0].mxu0
        %v1602 = vpop.f32.mrb[0].mxu0
        %v1603 = vadd.f32 0.0, %v1602
        %v1604 = vpop.f32.mrb[0].mxu0
        %1605 = vmatprep.mubr.bf16.mxu0 0
        %1606 = vmatmul.mubr.bf16.gmra.mrb[0].mxu0 %v1460
        %v1607 = vpop.f32.mrb[0].mxu0
        %v1608 = vadd.f32 0.0, %v1607
        %v1609 = vpop.f32.mrb[0].mxu0
        %v1610 = vpop.f32.mrb[0].mxu0
        %v1611 = vadd.f32 0.0, %v1610
        %v1612 = vpop.f32.mrb[0].mxu0
        %1613 = vmatprep.mubr.bf16.mxu0 0
        %1614 = vmatmul.mubr.bf16.gmra.mrb[0].mxu0 %v1463
        %v1615 = vpop.f32.mrb[0].mxu0
        %v1616 = vadd.f32 0.0, %v1615
        %v1617 = vpop.f32.mrb[0].mxu0
        %v1618 = vpop.f32.mrb[0].mxu0
        %v1619 = vadd.f32 0.0, %v1618
        %v1620 = vpop.f32.mrb[0].mxu0
        %1621 = vmatprep.mubr.bf16.mxu0 0
        %1622 = vmatmul.mubr.bf16.gmra.mrb[0].mxu0 %v1466
        %v1623 = vpop.f32.mrb[0].mxu0
        %v1624 = vadd.f32 0.0, %v1623
        %v1625 = vpop.f32.mrb[0].mxu0
        %v1626 = vpop.f32.mrb[0].mxu0
        %v1627 = vadd.f32 0.0, %v1626
        %v1628 = vpop.f32.mrb[0].mxu0
        %1629 = vmatprep.mubr.bf16.mxu0 0
        %1630 = vmatmul.mubr.bf16.gmra.mrb[0].mxu0 %v1469
        %v1631 = vpop.f32.mrb[0].mxu0
        %v1632 = vadd.f32 0.0, %v1631
        %v1633 = vpop.f32.mrb[0].mxu0
        %v1634 = vpop.f32.mrb[0].mxu0
        %v1635 = vadd.f32 0.0, %v1634
        %v1636 = vpop.f32.mrb[0].mxu0
        %1637 = vmatprep.mubr.bf16.mxu0 0
        %1638 = vmatmul.mubr.bf16.gmra.mrb[0].mxu0 %v1472
        %v1639 = vpop.f32.mrb[0].mxu0
        %v1640 = vadd.f32 0.0, %v1639
        %v1641 = vpop.f32.mrb[0].mxu0
        %v1642 = vpop.f32.mrb[0].mxu0
        %v1643 = vadd.f32 0.0, %v1642
        %v1644 = vpop.f32.mrb[0].mxu0
        %1645 = vdwg.mxu0
        %v1646 = vld [vmem:[#allocation2] sm:$0xff]
        %v1647 = vld [vmem:[#allocation2 + $0x8] sm:$0xff]
        %v1648 = vld [vmem:[#allocation2 + $0x10] sm:$0xff]
        %v1649 = vld [vmem:[#allocation2 + $0x18] sm:$0xff]
        %v1650 = vld [vmem:[#allocation2 + $0x20] sm:$0xff]
        %v1651 = vld [vmem:[#allocation2 + $0x28] sm:$0xff]
        %v1652 = vld [vmem:[#allocation2 + $0x30] sm:$0xff]
        %v1653 = vld [vmem:[#allocation2 + $0x38] sm:$0xff]
        %v1654 = vld [vmem:[#allocation2 + $0x40] sm:$0xff]
        %v1655 = vld [vmem:[#allocation2 + $0x48] sm:$0xff]
        %v1656 = vld [vmem:[#allocation2 + $0x50] sm:$0xff]
        %v1657 = vld [vmem:[#allocation2 + $0x58] sm:$0xff]
        %v1658 = vld [vmem:[#allocation2 + $0x60] sm:$0xff]
        %v1659 = vld [vmem:[#allocation2 + $0x68] sm:$0xff]
        %v1660 = vld [vmem:[#allocation2 + $0x70] sm:$0xff]
        %v1661 = vld [vmem:[#allocation2 + $0x78] sm:$0xff]
        %v1662 = vld [vmem:[#allocation2 + $0x80] sm:$0xff]
        %v1663 = vld [vmem:[#allocation2 + $0x88] sm:$0xff]
        %v1664 = vld [vmem:[#allocation2 + $0x90] sm:$0xff]
        %v1665 = vld [vmem:[#allocation2 + $0x98] sm:$0xff]
        %v1666 = vld [vmem:[#allocation2 + $0xa0] sm:$0xff]
        %v1667 = vld [vmem:[#allocation2 + $0xa8] sm:$0xff]
        %v1668 = vld [vmem:[#allocation2 + $0xb0] sm:$0xff]
        %v1669 = vld [vmem:[#allocation2 + $0xb8] sm:$0xff]
        %v1670 = vld [vmem:[#allocation2 + $0xc0] sm:$0xff]
        %v1671 = vld [vmem:[#allocation2 + $0xc8] sm:$0xff]
        %v1672 = vld [vmem:[#allocation2 + $0xd0] sm:$0xff]
        %v1673 = vld [vmem:[#allocation2 + $0xd8] sm:$0xff]
        %v1674 = vld [vmem:[#allocation2 + $0xe0] sm:$0xff]
        %v1675 = vld [vmem:[#allocation2 + $0xe8] sm:$0xff]
        %v1676 = vld [vmem:[#allocation2 + $0xf0] sm:$0xff]
        %v1677 = vld [vmem:[#allocation2 + $0xf8] sm:$0xff]
        %v1678 = vld [vmem:[#allocation2 + $0x100] sm:$0xff]
        %v1679 = vld [vmem:[#allocation2 + $0x108] sm:$0xff]
        %v1680 = vadd.f32 %v1646, %v1512
        %v1681 = vadd.f32 %v1647, %v1515
        %v1682 = vadd.f32 %v1648, %v1520
        %v1683 = vadd.f32 %v1649, %v1523
        %v1684 = vadd.f32 %v1650, %v1528
        %v1685 = vadd.f32 %v1651, %v1531
        %v1686 = vadd.f32 %v1652, %v1536
        %v1687 = vadd.f32 %v1653, %v1539
        %v1688 = vadd.f32 %v1654, %v1544
        %v1689 = vadd.f32 %v1655, %v1547
        %v1690 = vadd.f32 %v1656, %v1552
        %v1691 = vadd.f32 %v1657, %v1555
        %v1692 = vadd.f32 %v1658, %v1560
        %v1693 = vadd.f32 %v1659, %v1563
        %v1694 = vadd.f32 %v1660, %v1568
        %v1695 = vadd.f32 %v1661, %v1571
        %v1696 = vadd.f32 %v1662, %v1576
        %v1697 = vadd.f32 %v1663, %v1579
        %v1698 = vadd.f32 %v1664, %v1584
        %v1699 = vadd.f32 %v1665, %v1587
        %v1700 = vadd.f32 %v1666, %v1592
        %v1701 = vadd.f32 %v1667, %v1595
        %v1702 = vadd.f32 %v1668, %v1600
        %v1703 = vadd.f32 %v1669, %v1603
        %v1704 = vadd.f32 %v1670, %v1608
        %v1705 = vadd.f32 %v1671, %v1611
        %v1706 = vadd.f32 %v1672, %v1616
        %v1707 = vadd.f32 %v1673, %v1619
        %v1708 = vadd.f32 %v1674, %v1624
        %v1709 = vadd.f32 %v1675, %v1627
        %v1710 = vadd.f32 %v1676, %v1632
        %v1711 = vadd.f32 %v1677, %v1635
        %v1712 = vadd.f32 %v1678, %v1640
        %v1713 = vadd.f32 %v1679, %v1643
        %1714 = vst [vmem:[#allocation2] sm:$0xff] %v1680
        %1715 = vst [vmem:[#allocation2 + $0x8] sm:$0xff] %v1681
        %1716 = vst [vmem:[#allocation2 + $0x10] sm:$0xff] %v1682
        %1717 = vst [vmem:[#allocation2 + $0x18] sm:$0xff] %v1683
        %1718 = vst [vmem:[#allocation2 + $0x20] sm:$0xff] %v1684
        %1719 = vst [vmem:[#allocation2 + $0x28] sm:$0xff] %v1685
        %1720 = vst [vmem:[#allocation2 + $0x30] sm:$0xff] %v1686
        %1721 = vst [vmem:[#allocation2 + $0x38] sm:$0xff] %v1687
        %1722 = vst [vmem:[#allocation2 + $0x40] sm:$0xff] %v1688
        %1723 = vst [vmem:[#allocation2 + $0x48] sm:$0xff] %v1689
        %1724 = vst [vmem:[#allocation2 + $0x50] sm:$0xff] %v1690
        %1725 = vst [vmem:[#allocation2 + $0x58] sm:$0xff] %v1691
        %1726 = vst [vmem:[#allocation2 + $0x60] sm:$0xff] %v1692
        %1727 = vst [vmem:[#allocation2 + $0x68] sm:$0xff] %v1693
        %1728 = vst [vmem:[#allocation2 + $0x70] sm:$0xff] %v1694
        %1729 = vst [vmem:[#allocation2 + $0x78] sm:$0xff] %v1695
        %1730 = vst [vmem:[#allocation2 + $0x80] sm:$0xff] %v1696
        %1731 = vst [vmem:[#allocation2 + $0x88] sm:$0xff] %v1697
        %1732 = vst [vmem:[#allocation2 + $0x90] sm:$0xff] %v1698
        %1733 = vst [vmem:[#allocation2 + $0x98] sm:$0xff] %v1699
        %1734 = vst [vmem:[#allocation2 + $0xa0] sm:$0xff] %v1700
        %1735 = vst [vmem:[#allocation2 + $0xa8] sm:$0xff] %v1701
        %1736 = vst [vmem:[#allocation2 + $0xb0] sm:$0xff] %v1702
        %1737 = vst [vmem:[#allocation2 + $0xb8] sm:$0xff] %v1703
        %1738 = vst [vmem:[#allocation2 + $0xc0] sm:$0xff] %v1704
        %1739 = vst [vmem:[#allocation2 + $0xc8] sm:$0xff] %v1705
        %1740 = vst [vmem:[#allocation2 + $0xd0] sm:$0xff] %v1706
        %1741 = vst [vmem:[#allocation2 + $0xd8] sm:$0xff] %v1707
        %1742 = vst [vmem:[#allocation2 + $0xe0] sm:$0xff] %v1708
        %1743 = vst [vmem:[#allocation2 + $0xe8] sm:$0xff] %v1709
        %1744 = vst [vmem:[#allocation2 + $0xf0] sm:$0xff] %v1710
        %1745 = vst [vmem:[#allocation2 + $0xf8] sm:$0xff] %v1711
        %1746 = vst [vmem:[#allocation2 + $0x100] sm:$0xff] %v1712
        %1747 = vst [vmem:[#allocation2 + $0x108] sm:$0xff] %v1713
        %v1748 = vld [vmem:[%s168 + $0x8] sm:$0xe]
        %v1749 = vld [vmem:[%s168 + $0xc] sm:$0xf]
        %v1750 = vld [vmem:[%s168 + $0x10] sm:$0xf]
        %v1751 = vld [vmem:[%s168 + $0x14] sm:$0xf]
        %v1752 = vld [vmem:[%s168 + $0x18] sm:$0xf]
        %v1753 = vld [vmem:[%s168 + $0x1c] sm:$0xf]
        %v1754 = vld [vmem:[%s168 + $0x20] sm:$0xf]
        %v1755 = vld [vmem:[%s168 + $0x24] sm:$0xf]
        %v1756 = vld [vmem:[%s168 + $0x28] sm:$0xf]
        %v1757 = vld [vmem:[%s168 + $0x2c] sm:$0xf]
        %v1758 = vld [vmem:[%s168 + $0x30] sm:$0xf]
        %v1759 = vld [vmem:[%s168 + $0x34] sm:$0xf]
        %v1760 = vld [vmem:[%s168 + $0x38] sm:$0xf]
        %v1761 = vld [vmem:[%s168 + $0x3c] sm:$0xf]
        %v1762 = vld [vmem:[%s168 + $0x40] sm:$0xf]
        %v1763 = vld [vmem:[%s168 + $0x44] sm:$0xf]
        %v1764 = vld [vmem:[%s168 + $0x48] sm:$0xf]
        %v1765 = vld [vmem:[%s168 + $0x4c] sm:$0xf]
        %v1766 = vld [vmem:[%s168 + $0x50] sm:$0xf]
        %v1767 = vld [vmem:[%s168 + $0x54] sm:$0xf]
        %v1768 = vld [vmem:[%s168 + $0x58] sm:$0xf]
        %v1769 = vld [vmem:[%s168 + $0x5c] sm:$0xf]
        %v1770 = vld [vmem:[%s168 + $0x60] sm:$0xf]
        %v1771 = vld [vmem:[%s168 + $0x64] sm:$0xf]
        %v1772 = vld [vmem:[%s168 + $0x68] sm:$0xf]
        %v1773 = vld [vmem:[%s168 + $0x6c] sm:$0xf]
        %v1774 = vld [vmem:[%s168 + $0x70] sm:$0xf]
        %v1775 = vld [vmem:[%s168 + $0x74] sm:$0xf]
        %v1776 = vld [vmem:[%s168 + $0x78] sm:$0xf]
        %v1777 = vld [vmem:[%s168 + $0x7c] sm:$0xf]
        %v1778 = vld [vmem:[%s168 + $0x80] sm:$0xf]
        %v1779 = vld [vmem:[%s168 + $0x84] sm:$0xf]
        %v1780 = vld [vmem:[%s168 + $0x88] sm:$0xf]
        %v1781 = vld [vmem:[%s168 + $0x8c] sm:$0xf]
        %v1782 = vld [vmem:[%s168 + $0x90] sm:$0x1]
        %s1783 = scalar_lea.vmem %s1, 24
        %v1784 = vld [vmem:[%s1783] sm:$0xf]
        %v1785 = vld [vmem:[%s1783 + $0x4] sm:$0x3]
        %v1821 = vunpack.c.l.b16 %v1748
        %v1822 = vunpack.c.l.b16 %v1749
        %v1823 = vunpack.c.l.b16 %v1750
        %v1824 = vunpack.c.l.b16 %v1751
        %v1825 = vunpack.c.l.b16 %v1752
        %v1826 = vunpack.c.l.b16 %v1753
        %v1827 = vunpack.c.l.b16 %v1754
        %v1828 = vunpack.c.l.b16 %v1755
        %v1829 = vunpack.c.l.b16 %v1756
        %v1830 = vunpack.c.l.b16 %v1757
        %v1831 = vunpack.c.l.b16 %v1758
        %v1832 = vunpack.c.l.b16 %v1759
        %v1833 = vunpack.c.l.b16 %v1760
        %v1834 = vunpack.c.l.b16 %v1761
        %v1835 = vunpack.c.l.b16 %v1762
        %v1836 = vunpack.c.l.b16 %v1763
        %v1837 = vunpack.c.l.b16 %v1764
        %v1838 = vunpack.c.l.b16 %v1765
        %v1839 = vunpack.c.l.b16 %v1766
        %v1840 = vunpack.c.l.b16 %v1767
        %v1841 = vunpack.c.l.b16 %v1768
        %v1842 = vunpack.c.l.b16 %v1769
        %v1843 = vunpack.c.l.b16 %v1770
        %v1844 = vunpack.c.l.b16 %v1771
        %v1845 = vunpack.c.l.b16 %v1772
        %v1846 = vunpack.c.l.b16 %v1773
        %v1847 = vunpack.c.l.b16 %v1774
        %v1848 = vunpack.c.l.b16 %v1775
        %v1849 = vunpack.c.l.b16 %v1776
        %v1850 = vunpack.c.l.b16 %v1777
        %v1851 = vunpack.c.l.b16 %v1778
        %v1852 = vunpack.c.l.b16 %v1779
        %v1853 = vunpack.c.l.b16 %v1780
        %v1854 = vunpack.c.l.b16 %v1781
        %v1855 = vunpack.c.l.b16 %v1782
        %v1856 = vpack.c.b16 %v1822, %v1821
        %v1857 = vpack.c.b16 %v1824, %v1823
        %v1858 = vpack.c.b16 %v1826, %v1825
        %v1859 = vpack.c.b16 %v1828, %v1827
        %v1860 = vpack.c.b16 %v1830, %v1829
        %v1861 = vpack.c.b16 %v1832, %v1831
        %v1862 = vpack.c.b16 %v1834, %v1833
        %v1863 = vpack.c.b16 %v1836, %v1835
        %v1864 = vpack.c.b16 %v1838, %v1837
        %v1865 = vpack.c.b16 %v1840, %v1839
        %v1866 = vpack.c.b16 %v1842, %v1841
        %v1867 = vpack.c.b16 %v1844, %v1843
        %v1868 = vpack.c.b16 %v1846, %v1845
        %v1869 = vpack.c.b16 %v1848, %v1847
        %v1870 = vpack.c.b16 %v1850, %v1849
        %v1871 = vpack.c.b16 %v1852, %v1851
        %v1872 = vpack.c.b16 %v1854, %v1853
        %v1873 = vpack.c.b16 %v1855, %v1855
        %vm1874 = vcmask 1046528
        %v1875 = vrot.slane %v1856, 1
        %v1876 = vrot.slane %v1857, 1
        %v1877 = vsel %vm1874, %v1875, %v1876
        %v1878 = vrot.slane %v1858, 1
        %v1879 = vsel %vm1874, %v1876, %v1878
        %v1880 = vrot.slane %v1859, 1
        %v1881 = vsel %vm1874, %v1878, %v1880
        %v1882 = vrot.slane %v1860, 1
        %v1883 = vsel %vm1874, %v1880, %v1882
        %v1884 = vrot.slane %v1861, 1
        %v1885 = vsel %vm1874, %v1882, %v1884
        %v1886 = vrot.slane %v1862, 1
        %v1887 = vsel %vm1874, %v1884, %v1886
        %v1888 = vrot.slane %v1863, 1
        %v1889 = vsel %vm1874, %v1886, %v1888
        %v1890 = vrot.slane %v1864, 1
        %v1891 = vsel %vm1874, %v1888, %v1890
        %v1892 = vrot.slane %v1865, 1
        %v1893 = vsel %vm1874, %v1890, %v1892
        %v1894 = vrot.slane %v1866, 1
        %v1895 = vsel %vm1874, %v1892, %v1894
        %v1896 = vrot.slane %v1867, 1
        %v1897 = vsel %vm1874, %v1894, %v1896
        %v1898 = vrot.slane %v1868, 1
        %v1899 = vsel %vm1874, %v1896, %v1898
        %v1900 = vrot.slane %v1869, 1
        %v1901 = vsel %vm1874, %v1898, %v1900
        %v1902 = vrot.slane %v1870, 1
        %v1903 = vsel %vm1874, %v1900, %v1902
        %v1904 = vrot.slane %v1871, 1
        %v1905 = vsel %vm1874, %v1902, %v1904
        %v1906 = vrot.slane %v1872, 1
        %v1907 = vsel %vm1874, %v1904, %v1906
        %v1908 = vrot.slane %v1873, 1
        %v1909 = vsel %vm1874, %v1906, %v1908
        %v1912 = vunpack.c.l.b16 %v1784
        %v1913 = vunpack.c.l.b16 %v1785
        %v1914 = vpack.c.b16 %v1913, %v1912
        %v1916 = vsel %vm296, %v1877, 0
        %v1919 = vsel %vm296, %v1879, 0
        %v1922 = vsel %vm296, %v1881, 0
        %v1925 = vsel %vm296, %v1883, 0
        %v1928 = vsel %vm296, %v1885, 0
        %v1931 = vsel %vm296, %v1887, 0
        %v1934 = vsel %vm296, %v1889, 0
        %v1937 = vsel %vm296, %v1891, 0
        %v1940 = vsel %vm296, %v1893, 0
        %v1943 = vsel %vm296, %v1895, 0
        %v1946 = vsel %vm296, %v1897, 0
        %v1949 = vsel %vm296, %v1899, 0
        %v1952 = vsel %vm296, %v1901, 0
        %v1955 = vsel %vm296, %v1903, 0
        %v1958 = vsel %vm296, %v1905, 0
        %v1961 = vsel %vm296, %v1907, 0
        %v1964 = vsel %vm296, %v1909, 0
        %v1967 = vsel %vm348, %v1914, 0
        %1969 = vmatprep.subr.bf16.mxu0 0
        %1970 = vmatpush1.bf16.msra.mxu0 %v1967
        %1971 = vmatprep.subr.bf16.mxu0 0
        %1972 = vmatpush1.bf16.msra.mxu0 0
        %1973 = vmatprep.subr.bf16.mxu0 0
        %1974 = vmatpush1.bf16.msra.mxu0 0
        %1975 = vmatprep.subr.bf16.mxu0 0
        %1976 = vmatpush1.bf16.msra.mxu0 0
        %1977 = vmatprep.subr.bf16.mxu0 0
        %1978 = vmatpush1.bf16.msra.mxu0 0
        %1979 = vmatprep.subr.bf16.mxu0 0
        %1980 = vmatpush1.bf16.msra.mxu0 0
        %1981 = vmatprep.subr.bf16.mxu0 0
        %1982 = vmatpush1.bf16.msra.mxu0 0
        %1983 = vmatprep.subr.bf16.mxu0 0
        %1984 = vmatpush1.bf16.msra.mxu0 0
        %1985 = vmatprep.subr.bf16.mxu0 0
        %1986 = vmatpush1.bf16.msra.mxu0 0
        %1987 = vmatprep.subr.bf16.mxu0 0
        %1988 = vmatpush1.bf16.msra.mxu0 0
        %1989 = vmatprep.subr.bf16.mxu0 0
        %1990 = vmatpush1.bf16.msra.mxu0 0
        %1991 = vmatprep.subr.bf16.mxu0 0
        %1992 = vmatpush1.bf16.msra.mxu0 0
        %1993 = vmatprep.subr.bf16.mxu0 0
        %1994 = vmatpush1.bf16.msra.mxu0 0
        %1995 = vmatprep.subr.bf16.mxu0 0
        %1996 = vmatpush1.bf16.msra.mxu0 0
        %1997 = vmatprep.subr.bf16.mxu0 0
        %1998 = vmatpush1.bf16.msra.mxu0 0
        %1999 = vmatprep.subr.bf16.mxu0 0
        %2000 = vmatpush1.bf16.msra.mxu0 0
        %2001 = vmatprep.mubr.bf16.mxu0 0
        %2002 = vmatmul.mubr.bf16.gmra.mrb[0].mxu0 %v1916
        %v2003 = vpop.f32.mrb[0].mxu0
        %v2004 = vadd.f32 0.0, %v2003
        %v2005 = vpop.f32.mrb[0].mxu0
        %v2006 = vpop.f32.mrb[0].mxu0
        %v2007 = vadd.f32 0.0, %v2006
        %v2008 = vpop.f32.mrb[0].mxu0
        %2009 = vmatprep.mubr.bf16.mxu0 0
        %2010 = vmatmul.mubr.bf16.gmra.mrb[0].mxu0 %v1919
        %v2011 = vpop.f32.mrb[0].mxu0
        %v2012 = vadd.f32 0.0, %v2011
        %v2013 = vpop.f32.mrb[0].mxu0
        %v2014 = vpop.f32.mrb[0].mxu0
        %v2015 = vadd.f32 0.0, %v2014
        %v2016 = vpop.f32.mrb[0].mxu0
        %2017 = vmatprep.mubr.bf16.mxu0 0
        %2018 = vmatmul.mubr.bf16.gmra.mrb[0].mxu0 %v1922
        %v2019 = vpop.f32.mrb[0].mxu0
        %v2020 = vadd.f32 0.0, %v2019
        %v2021 = vpop.f32.mrb[0].mxu0
        %v2022 = vpop.f32.mrb[0].mxu0
        %v2023 = vadd.f32 0.0, %v2022
        %v2024 = vpop.f32.mrb[0].mxu0
        %2025 = vmatprep.mubr.bf16.mxu0 0
        %2026 = vmatmul.mubr.bf16.gmra.mrb[0].mxu0 %v1925
        %v2027 = vpop.f32.mrb[0].mxu0
        %v2028 = vadd.f32 0.0, %v2027
        %v2029 = vpop.f32.mrb[0].mxu0
        %v2030 = vpop.f32.mrb[0].mxu0
        %v2031 = vadd.f32 0.0, %v2030
        %v2032 = vpop.f32.mrb[0].mxu0
        %2033 = vmatprep.mubr.bf16.mxu0 0
        %2034 = vmatmul.mubr.bf16.gmra.mrb[0].mxu0 %v1928
        %v2035 = vpop.f32.mrb[0].mxu0
        %v2036 = vadd.f32 0.0, %v2035
        %v2037 = vpop.f32.mrb[0].mxu0
        %v2038 = vpop.f32.mrb[0].mxu0
        %v2039 = vadd.f32 0.0, %v2038
        %v2040 = vpop.f32.mrb[0].mxu0
        %2041 = vmatprep.mubr.bf16.mxu0 0
        %2042 = vmatmul.mubr.bf16.gmra.mrb[0].mxu0 %v1931
        %v2043 = vpop.f32.mrb[0].mxu0
        %v2044 = vadd.f32 0.0, %v2043
        %v2045 = vpop.f32.mrb[0].mxu0
        %v2046 = vpop.f32.mrb[0].mxu0
        %v2047 = vadd.f32 0.0, %v2046
        %v2048 = vpop.f32.mrb[0].mxu0
        %2049 = vmatprep.mubr.bf16.mxu0 0
        %2050 = vmatmul.mubr.bf16.gmra.mrb[0].mxu0 %v1934
        %v2051 = vpop.f32.mrb[0].mxu0
        %v2052 = vadd.f32 0.0, %v2051
        %v2053 = vpop.f32.mrb[0].mxu0
        %v2054 = vpop.f32.mrb[0].mxu0
        %v2055 = vadd.f32 0.0, %v2054
        %v2056 = vpop.f32.mrb[0].mxu0
        %2057 = vmatprep.mubr.bf16.mxu0 0
        %2058 = vmatmul.mubr.bf16.gmra.mrb[0].mxu0 %v1937
        %v2059 = vpop.f32.mrb[0].mxu0
        %v2060 = vadd.f32 0.0, %v2059
        %v2061 = vpop.f32.mrb[0].mxu0
        %v2062 = vpop.f32.mrb[0].mxu0
        %v2063 = vadd.f32 0.0, %v2062
        %v2064 = vpop.f32.mrb[0].mxu0
        %2065 = vmatprep.mubr.bf16.mxu0 0
        %2066 = vmatmul.mubr.bf16.gmra.mrb[0].mxu0 %v1940
        %v2067 = vpop.f32.mrb[0].mxu0
        %v2068 = vadd.f32 0.0, %v2067
        %v2069 = vpop.f32.mrb[0].mxu0
        %v2070 = vpop.f32.mrb[0].mxu0
        %v2071 = vadd.f32 0.0, %v2070
        %v2072 = vpop.f32.mrb[0].mxu0
        %2073 = vmatprep.mubr.bf16.mxu0 0
        %2074 = vmatmul.mubr.bf16.gmra.mrb[0].mxu0 %v1943
        %v2075 = vpop.f32.mrb[0].mxu0
        %v2076 = vadd.f32 0.0, %v2075
        %v2077 = vpop.f32.mrb[0].mxu0
        %v2078 = vpop.f32.mrb[0].mxu0
        %v2079 = vadd.f32 0.0, %v2078
        %v2080 = vpop.f32.mrb[0].mxu0
        %2081 = vmatprep.mubr.bf16.mxu0 0
        %2082 = vmatmul.mubr.bf16.gmra.mrb[0].mxu0 %v1946
        %v2083 = vpop.f32.mrb[0].mxu0
        %v2084 = vadd.f32 0.0, %v2083
        %v2085 = vpop.f32.mrb[0].mxu0
        %v2086 = vpop.f32.mrb[0].mxu0
        %v2087 = vadd.f32 0.0, %v2086
        %v2088 = vpop.f32.mrb[0].mxu0
        %2089 = vmatprep.mubr.bf16.mxu0 0
        %2090 = vmatmul.mubr.bf16.gmra.mrb[0].mxu0 %v1949
        %v2091 = vpop.f32.mrb[0].mxu0
        %v2092 = vadd.f32 0.0, %v2091
        %v2093 = vpop.f32.mrb[0].mxu0
        %v2094 = vpop.f32.mrb[0].mxu0
        %v2095 = vadd.f32 0.0, %v2094
        %v2096 = vpop.f32.mrb[0].mxu0
        %2097 = vmatprep.mubr.bf16.mxu0 0
        %2098 = vmatmul.mubr.bf16.gmra.mrb[0].mxu0 %v1952
        %v2099 = vpop.f32.mrb[0].mxu0
        %v2100 = vadd.f32 0.0, %v2099
        %v2101 = vpop.f32.mrb[0].mxu0
        %v2102 = vpop.f32.mrb[0].mxu0
        %v2103 = vadd.f32 0.0, %v2102
        %v2104 = vpop.f32.mrb[0].mxu0
        %2105 = vmatprep.mubr.bf16.mxu0 0
        %2106 = vmatmul.mubr.bf16.gmra.mrb[0].mxu0 %v1955
        %v2107 = vpop.f32.mrb[0].mxu0
        %v2108 = vadd.f32 0.0, %v2107
        %v2109 = vpop.f32.mrb[0].mxu0
        %v2110 = vpop.f32.mrb[0].mxu0
        %v2111 = vadd.f32 0.0, %v2110
        %v2112 = vpop.f32.mrb[0].mxu0
        %2113 = vmatprep.mubr.bf16.mxu0 0
        %2114 = vmatmul.mubr.bf16.gmra.mrb[0].mxu0 %v1958
        %v2115 = vpop.f32.mrb[0].mxu0
        %v2116 = vadd.f32 0.0, %v2115
        %v2117 = vpop.f32.mrb[0].mxu0
        %v2118 = vpop.f32.mrb[0].mxu0
        %v2119 = vadd.f32 0.0, %v2118
        %v2120 = vpop.f32.mrb[0].mxu0
        %2121 = vmatprep.mubr.bf16.mxu0 0
        %2122 = vmatmul.mubr.bf16.gmra.mrb[0].mxu0 %v1961
        %v2123 = vpop.f32.mrb[0].mxu0
        %v2124 = vadd.f32 0.0, %v2123
        %v2125 = vpop.f32.mrb[0].mxu0
        %v2126 = vpop.f32.mrb[0].mxu0
        %v2127 = vadd.f32 0.0, %v2126
        %v2128 = vpop.f32.mrb[0].mxu0
        %2129 = vmatprep.mubr.bf16.mxu0 0
        %2130 = vmatmul.mubr.bf16.gmra.mrb[0].mxu0 %v1964
        %v2131 = vpop.f32.mrb[0].mxu0
        %v2132 = vadd.f32 0.0, %v2131
        %v2133 = vpop.f32.mrb[0].mxu0
        %v2134 = vpop.f32.mrb[0].mxu0
        %v2135 = vadd.f32 0.0, %v2134
        %v2136 = vpop.f32.mrb[0].mxu0
        %2137 = vdwg.mxu0
        %v2138 = vld [vmem:[#allocation2] sm:$0xff]
        %v2139 = vld [vmem:[#allocation2 + $0x8] sm:$0xff]
        %v2140 = vld [vmem:[#allocation2 + $0x10] sm:$0xff]
        %v2141 = vld [vmem:[#allocation2 + $0x18] sm:$0xff]
        %v2142 = vld [vmem:[#allocation2 + $0x20] sm:$0xff]
        %v2143 = vld [vmem:[#allocation2 + $0x28] sm:$0xff]
        %v2144 = vld [vmem:[#allocation2 + $0x30] sm:$0xff]
        %v2145 = vld [vmem:[#allocation2 + $0x38] sm:$0xff]
        %v2146 = vld [vmem:[#allocation2 + $0x40] sm:$0xff]
        %v2147 = vld [vmem:[#allocation2 + $0x48] sm:$0xff]
        %v2148 = vld [vmem:[#allocation2 + $0x50] sm:$0xff]
        %v2149 = vld [vmem:[#allocation2 + $0x58] sm:$0xff]
        %v2150 = vld [vmem:[#allocation2 + $0x60] sm:$0xff]
        %v2151 = vld [vmem:[#allocation2 + $0x68] sm:$0xff]
        %v2152 = vld [vmem:[#allocation2 + $0x70] sm:$0xff]
        %v2153 = vld [vmem:[#allocation2 + $0x78] sm:$0xff]
        %v2154 = vld [vmem:[#allocation2 + $0x80] sm:$0xff]
        %v2155 = vld [vmem:[#allocation2 + $0x88] sm:$0xff]
        %v2156 = vld [vmem:[#allocation2 + $0x90] sm:$0xff]
        %v2157 = vld [vmem:[#allocation2 + $0x98] sm:$0xff]
        %v2158 = vld [vmem:[#allocation2 + $0xa0] sm:$0xff]
        %v2159 = vld [vmem:[#allocation2 + $0xa8] sm:$0xff]
        %v2160 = vld [vmem:[#allocation2 + $0xb0] sm:$0xff]
        %v2161 = vld [vmem:[#allocation2 + $0xb8] sm:$0xff]
        %v2162 = vld [vmem:[#allocation2 + $0xc0] sm:$0xff]
        %v2163 = vld [vmem:[#allocation2 + $0xc8] sm:$0xff]
        %v2164 = vld [vmem:[#allocation2 + $0xd0] sm:$0xff]
        %v2165 = vld [vmem:[#allocation2 + $0xd8] sm:$0xff]
        %v2166 = vld [vmem:[#allocation2 + $0xe0] sm:$0xff]
        %v2167 = vld [vmem:[#allocation2 + $0xe8] sm:$0xff]
        %v2168 = vld [vmem:[#allocation2 + $0xf0] sm:$0xff]
        %v2169 = vld [vmem:[#allocation2 + $0xf8] sm:$0xff]
        %v2170 = vld [vmem:[#allocation2 + $0x100] sm:$0xff]
        %v2171 = vld [vmem:[#allocation2 + $0x108] sm:$0xff]
        %v2172 = vadd.f32 %v2138, %v2004
        %v2173 = vadd.f32 %v2139, %v2007
        %v2174 = vadd.f32 %v2140, %v2012
        %v2175 = vadd.f32 %v2141, %v2015
        %v2176 = vadd.f32 %v2142, %v2020
        %v2177 = vadd.f32 %v2143, %v2023
        %v2178 = vadd.f32 %v2144, %v2028
        %v2179 = vadd.f32 %v2145, %v2031
        %v2180 = vadd.f32 %v2146, %v2036
        %v2181 = vadd.f32 %v2147, %v2039
        %v2182 = vadd.f32 %v2148, %v2044
        %v2183 = vadd.f32 %v2149, %v2047
        %v2184 = vadd.f32 %v2150, %v2052
        %v2185 = vadd.f32 %v2151, %v2055
        %v2186 = vadd.f32 %v2152, %v2060
        %v2187 = vadd.f32 %v2153, %v2063
        %v2188 = vadd.f32 %v2154, %v2068
        %v2189 = vadd.f32 %v2155, %v2071
        %v2190 = vadd.f32 %v2156, %v2076
        %v2191 = vadd.f32 %v2157, %v2079
        %v2192 = vadd.f32 %v2158, %v2084
        %v2193 = vadd.f32 %v2159, %v2087
        %v2194 = vadd.f32 %v2160, %v2092
        %v2195 = vadd.f32 %v2161, %v2095
        %v2196 = vadd.f32 %v2162, %v2100
        %v2197 = vadd.f32 %v2163, %v2103
        %v2198 = vadd.f32 %v2164, %v2108
        %v2199 = vadd.f32 %v2165, %v2111
        %v2200 = vadd.f32 %v2166, %v2116
        %v2201 = vadd.f32 %v2167, %v2119
        %v2202 = vadd.f32 %v2168, %v2124
        %v2203 = vadd.f32 %v2169, %v2127
        %v2204 = vadd.f32 %v2170, %v2132
        %v2205 = vadd.f32 %v2171, %v2135
        %2206 = vst [vmem:[#allocation2] sm:$0xff] %v2172
        %2207 = vst [vmem:[#allocation2 + $0x8] sm:$0xff] %v2173
        %2208 = vst [vmem:[#allocation2 + $0x10] sm:$0xff] %v2174
        %2209 = vst [vmem:[#allocation2 + $0x18] sm:$0xff] %v2175
        %2210 = vst [vmem:[#allocation2 + $0x20] sm:$0xff] %v2176
        %2211 = vst [vmem:[#allocation2 + $0x28] sm:$0xff] %v2177
        %2212 = vst [vmem:[#allocation2 + $0x30] sm:$0xff] %v2178
        %2213 = vst [vmem:[#allocation2 + $0x38] sm:$0xff] %v2179
        %2214 = vst [vmem:[#allocation2 + $0x40] sm:$0xff] %v2180
        %2215 = vst [vmem:[#allocation2 + $0x48] sm:$0xff] %v2181
        %2216 = vst [vmem:[#allocation2 + $0x50] sm:$0xff] %v2182
        %2217 = vst [vmem:[#allocation2 + $0x58] sm:$0xff] %v2183
        %2218 = vst [vmem:[#allocation2 + $0x60] sm:$0xff] %v2184
        %2219 = vst [vmem:[#allocation2 + $0x68] sm:$0xff] %v2185
        %2220 = vst [vmem:[#allocation2 + $0x70] sm:$0xff] %v2186
        %2221 = vst [vmem:[#allocation2 + $0x78] sm:$0xff] %v2187
        %2222 = vst [vmem:[#allocation2 + $0x80] sm:$0xff] %v2188
        %2223 = vst [vmem:[#allocation2 + $0x88] sm:$0xff] %v2189
        %2224 = vst [vmem:[#allocation2 + $0x90] sm:$0xff] %v2190
        %2225 = vst [vmem:[#allocation2 + $0x98] sm:$0xff] %v2191
        %2226 = vst [vmem:[#allocation2 + $0xa0] sm:$0xff] %v2192
        %2227 = vst [vmem:[#allocation2 + $0xa8] sm:$0xff] %v2193
        %2228 = vst [vmem:[#allocation2 + $0xb0] sm:$0xff] %v2194
        %2229 = vst [vmem:[#allocation2 + $0xb8] sm:$0xff] %v2195
        %2230 = vst [vmem:[#allocation2 + $0xc0] sm:$0xff] %v2196
        %2231 = vst [vmem:[#allocation2 + $0xc8] sm:$0xff] %v2197
        %2232 = vst [vmem:[#allocation2 + $0xd0] sm:$0xff] %v2198
        %2233 = vst [vmem:[#allocation2 + $0xd8] sm:$0xff] %v2199
        %2234 = vst [vmem:[#allocation2 + $0xe0] sm:$0xff] %v2200
        %2235 = vst [vmem:[#allocation2 + $0xe8] sm:$0xff] %v2201
        %2236 = vst [vmem:[#allocation2 + $0xf0] sm:$0xff] %v2202
        %2237 = vst [vmem:[#allocation2 + $0xf8] sm:$0xff] %v2203
        %2238 = vst [vmem:[#allocation2 + $0x100] sm:$0xff] %v2204
        %2239 = vst [vmem:[#allocation2 + $0x108] sm:$0xff] %v2205
        %v2240 = vld [vmem:[#allocation2] sm:$0xff]
        %v2241 = vld [vmem:[#allocation2 + $0x8] sm:$0xff]
        %v2242 = vld [vmem:[#allocation2 + $0x10] sm:$0xff]
        %v2243 = vld [vmem:[#allocation2 + $0x18] sm:$0xff]
        %v2244 = vld [vmem:[#allocation2 + $0x20] sm:$0xff]
        %v2245 = vld [vmem:[#allocation2 + $0x28] sm:$0xff]
        %v2246 = vld [vmem:[#allocation2 + $0x30] sm:$0xff]
        %v2247 = vld [vmem:[#allocation2 + $0x38] sm:$0xff]
        %v2248 = vld [vmem:[#allocation2 + $0x40] sm:$0xff]
        %v2249 = vld [vmem:[#allocation2 + $0x48] sm:$0xff]
        %v2250 = vld [vmem:[#allocation2 + $0x50] sm:$0xff]
        %v2251 = vld [vmem:[#allocation2 + $0x58] sm:$0xff]
        %v2252 = vld [vmem:[#allocation2 + $0x60] sm:$0xff]
        %v2253 = vld [vmem:[#allocation2 + $0x68] sm:$0xff]
        %v2254 = vld [vmem:[#allocation2 + $0x70] sm:$0xff]
        %v2255 = vld [vmem:[#allocation2 + $0x78] sm:$0xff]
        %v2256 = vld [vmem:[#allocation2 + $0x80] sm:$0xff]
        %v2257 = vld [vmem:[#allocation2 + $0x88] sm:$0xff]
        %v2258 = vld [vmem:[#allocation2 + $0x90] sm:$0xff]
        %v2259 = vld [vmem:[#allocation2 + $0x98] sm:$0xff]
        %v2260 = vld [vmem:[#allocation2 + $0xa0] sm:$0xff]
        %v2261 = vld [vmem:[#allocation2 + $0xa8] sm:$0xff]
        %v2262 = vld [vmem:[#allocation2 + $0xb0] sm:$0xff]
        %v2263 = vld [vmem:[#allocation2 + $0xb8] sm:$0xff]
        %v2264 = vld [vmem:[#allocation2 + $0xc0] sm:$0xff]
        %v2265 = vld [vmem:[#allocation2 + $0xc8] sm:$0xff]
        %v2266 = vld [vmem:[#allocation2 + $0xd0] sm:$0xff]
        %v2267 = vld [vmem:[#allocation2 + $0xd8] sm:$0xff]
        %v2268 = vld [vmem:[#allocation2 + $0xe0] sm:$0xff]
        %v2269 = vld [vmem:[#allocation2 + $0xe8] sm:$0xff]
        %v2270 = vld [vmem:[#allocation2 + $0xf0] sm:$0xff]
        %v2271 = vld [vmem:[#allocation2 + $0xf8] sm:$0xff]
        %v2272 = vld [vmem:[#allocation2 + $0x100] sm:$0xff]
        %v2273 = vld [vmem:[#allocation2 + $0x108] sm:$0xff]
        %v2274 = vld [vmem:[%s2] sm:$0x1]
        %v2276 = vlaneseq
        %v2277 = vshrl.u32 %v2276, 7
        %v2278 = vsub.s32 0, %v2277
        %v2279 = vrot.slane %v2274, %v2278
        %v2281 = vadd.f32 %v2240, %v2279
        %v2282 = vadd.f32 %v2241, %v2279
        %v2283 = vadd.f32 %v2242, %v2279
        %v2284 = vadd.f32 %v2243, %v2279
        %v2285 = vadd.f32 %v2244, %v2279
        %v2286 = vadd.f32 %v2245, %v2279
        %v2287 = vadd.f32 %v2246, %v2279
        %v2288 = vadd.f32 %v2247, %v2279
        %v2289 = vadd.f32 %v2248, %v2279
        %v2290 = vadd.f32 %v2249, %v2279
        %v2291 = vadd.f32 %v2250, %v2279
        %v2292 = vadd.f32 %v2251, %v2279
        %v2293 = vadd.f32 %v2252, %v2279
        %v2294 = vadd.f32 %v2253, %v2279
        %v2295 = vadd.f32 %v2254, %v2279
        %v2296 = vadd.f32 %v2255, %v2279
        %v2297 = vadd.f32 %v2256, %v2279
        %v2298 = vadd.f32 %v2257, %v2279
        %v2299 = vadd.f32 %v2258, %v2279
        %v2300 = vadd.f32 %v2259, %v2279
        %v2301 = vadd.f32 %v2260, %v2279
        %v2302 = vadd.f32 %v2261, %v2279
        %v2303 = vadd.f32 %v2262, %v2279
        %v2304 = vadd.f32 %v2263, %v2279
        %v2305 = vadd.f32 %v2264, %v2279
        %v2306 = vadd.f32 %v2265, %v2279
        %v2307 = vadd.f32 %v2266, %v2279
        %v2308 = vadd.f32 %v2267, %v2279
        %v2309 = vadd.f32 %v2268, %v2279
        %v2310 = vadd.f32 %v2269, %v2279
        %v2311 = vadd.f32 %v2270, %v2279
        %v2312 = vadd.f32 %v2271, %v2279
        %v2313 = vadd.f32 %v2272, %v2279
        %v2314 = vadd.f32 %v2273, %v2279
        %vm2315 = vcmp.gt.f32.partialorder %v2281, 0.0
        %vm2316 = vcmp.gt.f32.partialorder %v2282, 0.0
        %vm2317 = vcmp.gt.f32.partialorder %v2283, 0.0
        %vm2318 = vcmp.gt.f32.partialorder %v2284, 0.0
        %vm2319 = vcmp.gt.f32.partialorder %v2285, 0.0
        %vm2320 = vcmp.gt.f32.partialorder %v2286, 0.0
        %vm2321 = vcmp.gt.f32.partialorder %v2287, 0.0
        %vm2322 = vcmp.gt.f32.partialorder %v2288, 0.0
        %vm2323 = vcmp.gt.f32.partialorder %v2289, 0.0
        %vm2324 = vcmp.gt.f32.partialorder %v2290, 0.0
        %vm2325 = vcmp.gt.f32.partialorder %v2291, 0.0
        %vm2326 = vcmp.gt.f32.partialorder %v2292, 0.0
        %vm2327 = vcmp.gt.f32.partialorder %v2293, 0.0
        %vm2328 = vcmp.gt.f32.partialorder %v2294, 0.0
        %vm2329 = vcmp.gt.f32.partialorder %v2295, 0.0
        %vm2330 = vcmp.gt.f32.partialorder %v2296, 0.0
        %vm2331 = vcmp.gt.f32.partialorder %v2297, 0.0
        %vm2332 = vcmp.gt.f32.partialorder %v2298, 0.0
        %vm2333 = vcmp.gt.f32.partialorder %v2299, 0.0
        %vm2334 = vcmp.gt.f32.partialorder %v2300, 0.0
        %vm2335 = vcmp.gt.f32.partialorder %v2301, 0.0
        %vm2336 = vcmp.gt.f32.partialorder %v2302, 0.0
        %vm2337 = vcmp.gt.f32.partialorder %v2303, 0.0
        %vm2338 = vcmp.gt.f32.partialorder %v2304, 0.0
        %vm2339 = vcmp.gt.f32.partialorder %v2305, 0.0
        %vm2340 = vcmp.gt.f32.partialorder %v2306, 0.0
        %vm2341 = vcmp.gt.f32.partialorder %v2307, 0.0
        %vm2342 = vcmp.gt.f32.partialorder %v2308, 0.0
        %vm2343 = vcmp.gt.f32.partialorder %v2309, 0.0
        %vm2344 = vcmp.gt.f32.partialorder %v2310, 0.0
        %vm2345 = vcmp.gt.f32.partialorder %v2311, 0.0
        %vm2346 = vcmp.gt.f32.partialorder %v2312, 0.0
        %vm2347 = vcmp.gt.f32.partialorder %v2313, 0.0
        %vm2348 = vcmp.gt.f32.partialorder %v2314, 0.0
        %v2349 = vmul.f32 %v2281, 0.2
        %v2350 = vmul.f32 %v2282, 0.2
        %v2351 = vmul.f32 %v2283, 0.2
        %v2352 = vmul.f32 %v2284, 0.2
        %v2353 = vmul.f32 %v2285, 0.2
        %v2354 = vmul.f32 %v2286, 0.2
        %v2355 = vmul.f32 %v2287, 0.2
        %v2356 = vmul.f32 %v2288, 0.2
        %v2357 = vmul.f32 %v2289, 0.2
        %v2358 = vmul.f32 %v2290, 0.2
        %v2359 = vmul.f32 %v2291, 0.2
        %v2360 = vmul.f32 %v2292, 0.2
        %v2361 = vmul.f32 %v2293, 0.2
        %v2362 = vmul.f32 %v2294, 0.2
        %v2363 = vmul.f32 %v2295, 0.2
        %v2364 = vmul.f32 %v2296, 0.2
        %v2365 = vmul.f32 %v2297, 0.2
        %v2366 = vmul.f32 %v2298, 0.2
        %v2367 = vmul.f32 %v2299, 0.2
        %v2368 = vmul.f32 %v2300, 0.2
        %v2369 = vmul.f32 %v2301, 0.2
        %v2370 = vmul.f32 %v2302, 0.2
        %v2371 = vmul.f32 %v2303, 0.2
        %v2372 = vmul.f32 %v2304, 0.2
        %v2373 = vmul.f32 %v2305, 0.2
        %v2374 = vmul.f32 %v2306, 0.2
        %v2375 = vmul.f32 %v2307, 0.2
        %v2376 = vmul.f32 %v2308, 0.2
        %v2377 = vmul.f32 %v2309, 0.2
        %v2378 = vmul.f32 %v2310, 0.2
        %v2379 = vmul.f32 %v2311, 0.2
        %v2380 = vmul.f32 %v2312, 0.2
        %v2381 = vmul.f32 %v2313, 0.2
        %v2382 = vmul.f32 %v2314, 0.2
        %v2383 = vsel %vm2315, %v2281, %v2349
        %v2384 = vsel %vm2316, %v2282, %v2350
        %v2385 = vsel %vm2317, %v2283, %v2351
        %v2386 = vsel %vm2318, %v2284, %v2352
        %v2387 = vsel %vm2319, %v2285, %v2353
        %v2388 = vsel %vm2320, %v2286, %v2354
        %v2389 = vsel %vm2321, %v2287, %v2355
        %v2390 = vsel %vm2322, %v2288, %v2356
        %v2391 = vsel %vm2323, %v2289, %v2357
        %v2392 = vsel %vm2324, %v2290, %v2358
        %v2393 = vsel %vm2325, %v2291, %v2359
        %v2394 = vsel %vm2326, %v2292, %v2360
        %v2395 = vsel %vm2327, %v2293, %v2361
        %v2396 = vsel %vm2328, %v2294, %v2362
        %v2397 = vsel %vm2329, %v2295, %v2363
        %v2398 = vsel %vm2330, %v2296, %v2364
        %v2399 = vsel %vm2331, %v2297, %v2365
        %v2400 = vsel %vm2332, %v2298, %v2366
        %v2401 = vsel %vm2333, %v2299, %v2367
        %v2402 = vsel %vm2334, %v2300, %v2368
        %v2403 = vsel %vm2335, %v2301, %v2369
        %v2404 = vsel %vm2336, %v2302, %v2370
        %v2405 = vsel %vm2337, %v2303, %v2371
        %v2406 = vsel %vm2338, %v2304, %v2372
        %v2407 = vsel %vm2339, %v2305, %v2373
        %v2408 = vsel %vm2340, %v2306, %v2374
        %v2409 = vsel %vm2341, %v2307, %v2375
        %v2410 = vsel %vm2342, %v2308, %v2376
        %v2411 = vsel %vm2343, %v2309, %v2377
        %v2412 = vsel %vm2344, %v2310, %v2378
        %v2413 = vsel %vm2345, %v2311, %v2379
        %v2414 = vsel %vm2346, %v2312, %v2380
        %v2415 = vsel %vm2347, %v2313, %v2381
        %v2416 = vsel %vm2348, %v2314, %v2382
        %v2417 = vpack.c.bf16 %v2384, %v2383
        %v2418 = vpack.c.bf16 %v2386, %v2385
        %v2419 = vpack.c.bf16 %v2388, %v2387
        %v2420 = vpack.c.bf16 %v2390, %v2389
        %v2421 = vpack.c.bf16 %v2392, %v2391
        %v2422 = vpack.c.bf16 %v2394, %v2393
        %v2423 = vpack.c.bf16 %v2396, %v2395
        %v2424 = vpack.c.bf16 %v2398, %v2397
        %v2425 = vpack.c.bf16 %v2400, %v2399
        %v2426 = vpack.c.bf16 %v2402, %v2401
        %v2427 = vpack.c.bf16 %v2404, %v2403
        %v2428 = vpack.c.bf16 %v2406, %v2405
        %v2429 = vpack.c.bf16 %v2408, %v2407
        %v2430 = vpack.c.bf16 %v2410, %v2409
        %v2431 = vpack.c.bf16 %v2412, %v2411
        %v2432 = vpack.c.bf16 %v2414, %v2413
        %v2433 = vpack.c.bf16 %v2416, %v2415
        %v2451 = vunpack.c.l.b16 %v2417
        %v2452 = vunpack.c.h.b16 %v2417
        %v2453 = vunpack.c.l.b16 %v2418
        %v2454 = vunpack.c.h.b16 %v2418
        %v2455 = vunpack.c.l.b16 %v2419
        %v2456 = vunpack.c.h.b16 %v2419
        %v2457 = vunpack.c.l.b16 %v2420
        %v2458 = vunpack.c.h.b16 %v2420
        %v2459 = vunpack.c.l.b16 %v2421
        %v2460 = vunpack.c.h.b16 %v2421
        %v2461 = vunpack.c.l.b16 %v2422
        %v2462 = vunpack.c.h.b16 %v2422
        %v2463 = vunpack.c.l.b16 %v2423
        %v2464 = vunpack.c.h.b16 %v2423
        %v2465 = vunpack.c.l.b16 %v2424
        %v2466 = vunpack.c.h.b16 %v2424
        %v2467 = vunpack.c.l.b16 %v2425
        %v2468 = vunpack.c.h.b16 %v2425
        %v2469 = vunpack.c.l.b16 %v2426
        %v2470 = vunpack.c.h.b16 %v2426
        %v2471 = vunpack.c.l.b16 %v2427
        %v2472 = vunpack.c.h.b16 %v2427
        %v2473 = vunpack.c.l.b16 %v2428
        %v2474 = vunpack.c.h.b16 %v2428
        %v2475 = vunpack.c.l.b16 %v2429
        %v2476 = vunpack.c.h.b16 %v2429
        %v2477 = vunpack.c.l.b16 %v2430
        %v2478 = vunpack.c.h.b16 %v2430
        %v2479 = vunpack.c.l.b16 %v2431
        %v2480 = vunpack.c.h.b16 %v2431
        %v2481 = vunpack.c.l.b16 %v2432
        %v2482 = vunpack.c.h.b16 %v2432
        %v2483 = vunpack.c.l.b16 %v2433
        %v2484 = vunpack.c.h.b16 %v2433
        %v2485 = vpack.c.b16 %v2451, %v2451
        %v2486 = vpack.c.b16 %v2452, %v2452
        %v2487 = vpack.c.b16 %v2453, %v2453
        %v2488 = vpack.c.b16 %v2454, %v2454
        %v2489 = vpack.c.b16 %v2455, %v2455
        %v2490 = vpack.c.b16 %v2456, %v2456
        %v2491 = vpack.c.b16 %v2457, %v2457
        %v2492 = vpack.c.b16 %v2458, %v2458
        %v2493 = vpack.c.b16 %v2459, %v2459
        %v2494 = vpack.c.b16 %v2460, %v2460
        %v2495 = vpack.c.b16 %v2461, %v2461
        %v2496 = vpack.c.b16 %v2462, %v2462
        %v2497 = vpack.c.b16 %v2463, %v2463
        %v2498 = vpack.c.b16 %v2464, %v2464
        %v2499 = vpack.c.b16 %v2465, %v2465
        %v2500 = vpack.c.b16 %v2466, %v2466
        %v2501 = vpack.c.b16 %v2467, %v2467
        %v2502 = vpack.c.b16 %v2468, %v2468
        %v2503 = vpack.c.b16 %v2469, %v2469
        %v2504 = vpack.c.b16 %v2470, %v2470
        %v2505 = vpack.c.b16 %v2471, %v2471
        %v2506 = vpack.c.b16 %v2472, %v2472
        %v2507 = vpack.c.b16 %v2473, %v2473
        %v2508 = vpack.c.b16 %v2474, %v2474
        %v2509 = vpack.c.b16 %v2475, %v2475
        %v2510 = vpack.c.b16 %v2476, %v2476
        %v2511 = vpack.c.b16 %v2477, %v2477
        %v2512 = vpack.c.b16 %v2478, %v2478
        %v2513 = vpack.c.b16 %v2479, %v2479
        %v2514 = vpack.c.b16 %v2480, %v2480
        %v2515 = vpack.c.b16 %v2481, %v2481
        %v2516 = vpack.c.b16 %v2482, %v2482
        %v2517 = vpack.c.b16 %v2483, %v2483
        %v2518 = vpack.c.b16 %v2484, %v2484
        %2553 = vst [vmem:[%s163] sm:$0xf] %v2485
        %2554 = vst [vmem:[%s163 + $0x4] sm:$0xf] %v2486
        %2555 = vst [vmem:[%s163 + $0x8] sm:$0xf] %v2487
        %2556 = vst [vmem:[%s163 + $0xc] sm:$0xf] %v2488
        %2557 = vst [vmem:[%s163 + $0x10] sm:$0xf] %v2489
        %2558 = vst [vmem:[%s163 + $0x14] sm:$0xf] %v2490
        %2559 = vst [vmem:[%s163 + $0x18] sm:$0xf] %v2491
        %2560 = vst [vmem:[%s163 + $0x1c] sm:$0xf] %v2492
        %2561 = vst [vmem:[%s163 + $0x20] sm:$0xf] %v2493
        %2562 = vst [vmem:[%s163 + $0x24] sm:$0xf] %v2494
        %2563 = vst [vmem:[%s163 + $0x28] sm:$0xf] %v2495
        %2564 = vst [vmem:[%s163 + $0x2c] sm:$0xf] %v2496
        %2565 = vst [vmem:[%s163 + $0x30] sm:$0xf] %v2497
        %2566 = vst [vmem:[%s163 + $0x34] sm:$0xf] %v2498
        %2567 = vst [vmem:[%s163 + $0x38] sm:$0xf] %v2499
        %2568 = vst [vmem:[%s163 + $0x3c] sm:$0xf] %v2500
        %2569 = vst [vmem:[%s163 + $0x40] sm:$0xf] %v2501
        %2570 = vst [vmem:[%s163 + $0x44] sm:$0xf] %v2502
        %2571 = vst [vmem:[%s163 + $0x48] sm:$0xf] %v2503
        %2572 = vst [vmem:[%s163 + $0x4c] sm:$0xf] %v2504
        %2573 = vst [vmem:[%s163 + $0x50] sm:$0xf] %v2505
        %2574 = vst [vmem:[%s163 + $0x54] sm:$0xf] %v2506
        %2575 = vst [vmem:[%s163 + $0x58] sm:$0xf] %v2507
        %2576 = vst [vmem:[%s163 + $0x5c] sm:$0xf] %v2508
        %2577 = vst [vmem:[%s163 + $0x60] sm:$0xf] %v2509
        %2578 = vst [vmem:[%s163 + $0x64] sm:$0xf] %v2510
        %2579 = vst [vmem:[%s163 + $0x68] sm:$0xf] %v2511
        %2580 = vst [vmem:[%s163 + $0x6c] sm:$0xf] %v2512
        %2581 = vst [vmem:[%s163 + $0x70] sm:$0xf] %v2513
        %2582 = vst [vmem:[%s163 + $0x74] sm:$0xf] %v2514
        %2583 = vst [vmem:[%s163 + $0x78] sm:$0xf] %v2515
        %2584 = vst [vmem:[%s163 + $0x7c] sm:$0xf] %v2516
        %2585 = vst [vmem:[%s163 + $0x80] sm:$0xf] %v2517
        %2586 = vst [vmem:[%s163 + $0x84] sm:$0xf] %v2518
        %s2587 = sand.u32 %s93, 1
        %s2588 = scalar_lea.sflag [#allocation4], %s2587
        %s2589 = sand.u32 %s93, 1
        %s2590 = smul.addr %s2589, 136
        %s2591 = scalar_lea.vmem [#allocation3], %s2590
        // Predicated region
        $region33: #{tpu_custom_call.1} parent=31 // pred_check
          %p2592 = pneg %p103
        $region34: #{tpu_custom_call.1} parent=31 // pred_check_branch
          %2594 = sbr.rel (%p2592) target = $region36
        $region35: #{tpu_custom_call.1} parent=31 // pred_region
          %s2596 = ssub.s32 2176, 2176
          %2597 = vsyncadd %s2588, %s2596
          %s2598 = smul.addr %s17, 34
          %s2599 = smul.addr %s2598, 64
          %s2600 = scalar_lea.hbm %s3, %s2599
          %s2601 = sshll.u32 %s2591, 4
          %s2602 = int_to_ptr.vmem [resolvable:$true] %s2601
          %2607 = dma.vmem_to_hbm [thread:$0]  %s2602, 2176, %s2600, %s2588, 64, 64, 4
        $region36: #{tpu_custom_call.1} parent=31 // pred_fallthru
          _
      $region32: #{tpu_custom_call.1} parent=5 // pred_fallthru
        _
      %p2608 = scmp.le.s32.totalorder 2, %s12
      // Predicated region
      $region37: #{tpu_custom_call.1} parent=5 // pred_check
        %p2609 = pneg %p2608
      $region38: #{tpu_custom_call.1} parent=5 // pred_check_branch
        %2611 = sbr.rel (%p2609) target = $region40
      $region39: #{tpu_custom_call.1} parent=5 // pred_region
        %s2612 = ssub.s32 %s12, 2
        // Predicated region
        $region41: #{tpu_custom_call.1} parent=39 // pred_check
          %p2613 = pneg %p109
        $region42: #{tpu_custom_call.1} parent=39 // pred_check_branch
          %2615 = sbr.rel (%p2613) target = $region44
        $region43: #{tpu_custom_call.1} parent=39 // pred_region
          %s2616 = sand.u32 %s94, 1
          %s2617 = scalar_lea.sflag [#allocation4], %s2616
          %s2618 = sand.u32 %s94, 1
          %s2619 = smul.addr %s2618, 136
          %s2620 = scalar_lea.vmem [#allocation3], %s2619
          %2621 = dma.done %s2617, 2176
        $region44: #{tpu_custom_call.1} parent=39 // pred_fallthru
          _
      $region40: #{tpu_custom_call.1} parent=5 // pred_fallthru
        _
    $region6: #{tpu_custom_call.1} parent=1 // loop_footer
      %s16 = sadd.s32 1, %s12
    $region7: #{tpu_custom_call.1} parent=1 // loop_footer_branch
      %11 = sbr.rel target = $region3
    $region8: #{tpu_custom_call.1} parent=1 // loop_exit
      _
    %2622 = vsyncpa [#allocation4], 1
    %s2623 = scalar_lea.sflag [#allocation4], 1
    %2624 = vsyncpa %s2623, 1

</llo_original>
